<compile_context>
chip_gen: v5e
topology: v5e:2x2
jax: 0.10.0
libtpu: 0.0.40
codegen_flags: <defaults>
</compile_context>

<pallas_src>
import functools

import numpy as np
import jax
import jax.numpy as jnp
from jax.experimental import pallas as pl
from jax.experimental.pallas import tpu as pltpu


def _gauss_1d(filter_size: int, sigma: float) -> np.ndarray:
    """1-D Gaussian taps == softmax(-0.5*coords^2/sigma^2) (matches torch code)."""
    coords = np.arange(filter_size, dtype=np.float64) - (filter_size - 1) / 2.0
    g = np.exp(-0.5 * coords ** 2 / (sigma ** 2))
    return (g / g.sum()).astype(np.float32)


def _band_matrix(size: int, g1: np.ndarray) -> np.ndarray:
    """M[a, b] = g1[b - a + R] inside the band, else 0  (R = (F-1)//2).

    x @ M.T performs a 1-D 'SAME' zero-padded correlation with taps g1 along
    the last axis of x.
    """
    f = g1.shape[0]
    r = (f - 1) // 2
    idx = np.arange(size)
    d = idx[None, :] - idx[:, None] + r
    valid = (d >= 0) & (d < f)
    return np.where(valid, g1[np.clip(d, 0, f - 1)], 0.0).astype(np.float32)


def _ssim_kernel(t_ref, o_ref, mh_t_ref, mw_t_ref, out_ref, stack_ref, *, c1, c2):
    tn, c, h, w = t_ref.shape
    kc = tn * c
    k4 = 4 * kc

    # scale to [0, 255]; cast from native dtype to f32 in-kernel
    t = t_ref[...].astype(jnp.float32) * 127.5 + 127.5
    o = o_ref[...].astype(jnp.float32) * 127.5 + 127.5
    t = t.reshape(kc, h, w)
    o = o.reshape(kc, h, w)

    # stack [t, o, t*o, t*t + o*o] so one pair of MXU matmuls filters all four
    stack_ref[0 * kc:1 * kc] = t
    stack_ref[1 * kc:2 * kc] = o
    stack_ref[2 * kc:3 * kc] = t * o
    stack_ref[3 * kc:4 * kc] = t * t + o * o
    v = stack_ref[...]                                        # (4*kc, h, w)

    # separable Gaussian blur with exact zero 'SAME' padding via banded matrices.
    # The result is left in (w, h) orientation: everything downstream is
    # elementwise followed by a full spatial reduction, so orientation is moot.
    a = jnp.dot(v.reshape(k4 * h, w), mw_t_ref[...],
                preferred_element_type=jnp.float32)           # filter along W
    a = jnp.swapaxes(a.reshape(k4, h, w), -1, -2)             # (4*kc, w, h)
    fl = jnp.dot(a.reshape(k4 * w, h), mh_t_ref[...],
                 preferred_element_type=jnp.float32)          # filter along H
    fl = fl.reshape(k4, w, h)

    mu_t = fl[0 * kc:1 * kc]
    mu_o = fl[1 * kc:2 * kc]
    f_to = fl[2 * kc:3 * kc]
    f_ss = fl[3 * kc:4 * kc]

    num0 = 2.0 * mu_t * mu_o
    den0 = mu_t * mu_t + mu_o * mu_o
    luminance = (num0 + c1) / (den0 + c1)
    cs = (2.0 * f_to - num0 + c2) / (f_ss - den0 + c2)
    ssim_map = (luminance * cs).reshape(tn, c, w, h)

    # per-example mean over (C, H, W)
    s = jnp.sum(ssim_map, axis=-1, keepdims=True)             # (tn, c, w, 1)
    s = jnp.sum(s, axis=-2, keepdims=True)                    # (tn, c, 1, 1)
    s = jnp.sum(s, axis=1)                                    # (tn, 1, 1)
    out_ref[...] = s * (1.0 / float(c * h * w))


def ssim_loss(targets, outputs, global_batch_size, *, max_val=255.0,
              filter_size=11, filter_sigma=1.5, k1=0.01, k2=0.03, tile_n=None):
    """Forward pass of StructureSimilarityIndexMap. Returns the scalar loss."""
    assert targets.shape == outputs.shape
    n, c, h, w = targets.shape
    if tile_n is None:
        tile_n = min(8, n)

    g1 = _gauss_1d(filter_size, filter_sigma)
    m_h_t = jnp.asarray(_band_matrix(h, g1).T)                # (h, h)
    m_w_t = jnp.asarray(_band_matrix(w, g1).T)                # (w, w)

    c1 = float((k1 * max_val) ** 2)
    c2 = float((k2 * max_val) ** 2)

    kernel = functools.partial(_ssim_kernel, c1=c1, c2=c2)
    itemsize = jnp.dtype(targets.dtype).itemsize
    cost = pl.CostEstimate(
        flops=int(2 * 4 * n * c * h * w * (h + w) + 25 * n * c * h * w),
        transcendentals=int(2 * n * c * h * w),
        bytes_accessed=int(2 * n * c * h * w * itemsize + 4 * n + 4 * (h * h + w * w)),
    )

    per_example = pl.pallas_call(
        kernel,
        out_shape=jax.ShapeDtypeStruct((n, 1, 1), jnp.float32),
        grid_spec=pltpu.PrefetchScalarGridSpec(
            num_scalar_prefetch=0,
            grid=(pl.cdiv(n, tile_n),),
            in_specs=[
                pl.BlockSpec((tile_n, c, h, w), lambda i: (i, 0, 0, 0)),
                pl.BlockSpec((tile_n, c, h, w), lambda i: (i, 0, 0, 0)),
                pl.BlockSpec((h, h), lambda i: (0, 0)),
                pl.BlockSpec((w, w), lambda i: (0, 0)),
            ],
            out_specs=pl.BlockSpec((tile_n, 1, 1), lambda i: (i, 0, 0)),
            scratch_shapes=[pltpu.VMEM((4 * tile_n * c, h, w), jnp.float32)],
        ),
        compiler_params=pltpu.CompilerParams(
            dimension_semantics=("parallel",)),
        cost_estimate=cost,
    )(targets, outputs, m_h_t, m_w_t)

    per_example = per_example[:, 0, 0]                        # (n,)
    loss = jnp.sum(per_example) / global_batch_size
    return loss


def _ssim_reference(targets, outputs, global_batch_size, *, max_val=255.0,
                    filter_size=11, filter_sigma=1.5, k1=0.01, k2=0.03):
    """Pure-JAX reference matching the PyTorch SSIM module."""
    t = targets.astype(jnp.float32) * 127.5 + 127.5
    o = outputs.astype(jnp.float32) * 127.5 + 127.5
    n, c, h, w = t.shape
    g1 = jnp.asarray(_gauss_1d(filter_size, filter_sigma))
    k2d = jnp.outer(g1, g1)
    kern = jnp.tile(k2d[None, None], (c, 1, 1, 1))            # (C, 1, F, F)
    r = (filter_size - 1) // 2

    def filt(x):
        return jax.lax.conv_general_dilated(
            x, kern, window_strides=(1, 1), padding=[(r, r), (r, r)],
            dimension_numbers=("NCHW", "OIHW", "NCHW"),
            feature_group_count=c, precision=jax.lax.Precision.HIGHEST)

    c1 = (k1 * max_val) ** 2
    c2 = (k2 * max_val) ** 2
    mu_t = filt(t)
    mu_o = filt(o)
    num0 = 2.0 * mu_t * mu_o
    den0 = mu_t ** 2 + mu_o ** 2
    luminance = (num0 + c1) / (den0 + c1)
    cs = (2.0 * filt(t * o) - num0 + c2) / (filt(t * t + o * o) - den0 + c2)
    per_channel = jnp.mean(luminance * cs, axis=(-2, -1))     # (N, C)
    per_example = jnp.mean(per_channel, axis=-1)              # (N,)
    return jnp.sum(per_example) / global_batch_size


if __name__ == "__main__":
    key = jax.random.PRNGKey(0)
    kt, kn = jax.random.split(key)

    N, C, H, W = 4, 3, 16, 16
    targets = jax.random.uniform(kt, (N, C, H, W), minval=-1.0, maxval=1.0,
                                 dtype=jnp.float32)
    outputs = jnp.clip(
        targets + 0.2 * jax.random.normal(kn, (N, C, H, W), dtype=jnp.float32),
        -1.0, 1.0)
    global_batch_size = N

    loss = ssim_loss(targets, outputs, global_batch_size, tile_n=2)
    jax.block_until_ready(loss)

    ref = _ssim_reference(targets, outputs, global_batch_size)
    assert jnp.allclose(loss, ref, rtol=5e-3, atol=5e-3), (loss, ref)

    print("KERNEL_OK")
</pallas_src>

<mosaic_0001>
module attributes {stable_mosaic.version = 11 : i64} {
  func.func @_ssim_kernel(%arg0: i32, %arg1: memref<2x3x16x16xf32, #tpu.memory_space<vmem>>, %arg2: memref<2x3x16x16xf32, #tpu.memory_space<vmem>>, %arg3: memref<16x16xf32, #tpu.memory_space<vmem>>, %arg4: memref<16x16xf32, #tpu.memory_space<vmem>>, %arg5: memref<2x1x1xf32, #tpu.memory_space<vmem>>, %arg6: memref<24x16x16xf32, #tpu.memory_space<vmem>>) attributes {dimension_semantics = [#tpu.dimension_semantics<parallel>], iteration_bounds = array<i64: 2>, scalar_prefetch = 0 : i64, scratch_operands = 1 : i64, tpu.core_type = #tpu.core_type<tc>, window_params = [{transform_indices = @transform_0, window_bounds = array<i64: 2, 3, 16, 16>}, {transform_indices = @transform_1, window_bounds = array<i64: 2, 3, 16, 16>}, {pipeline_mode = #tpu.pipeline_mode<synchronous>, transform_indices = @transform_2, window_bounds = array<i64: 16, 16>}, {pipeline_mode = #tpu.pipeline_mode<synchronous>, transform_indices = @transform_3, window_bounds = array<i64: 16, 16>}, {transform_indices = @transform_4, window_bounds = array<i64: 2, 1, 1>}]} {
    %c0 = arith.constant 0 : index
    %c0_0 = arith.constant 0 : index
    %c0_1 = arith.constant 0 : index
    %c0_2 = arith.constant 0 : index
    %0 = vector.load %arg1[%c0, %c0_0, %c0_1, %c0_2] : memref<2x3x16x16xf32, #tpu.memory_space<vmem>>, vector<2x3x16x16xf32>
    %cst = arith.constant 1.275000e+02 : f32
    %1 = vector.broadcast %cst : f32 to vector<2x3x16x16xf32>
    %2 = arith.mulf %0, %1 : vector<2x3x16x16xf32>
    %cst_3 = arith.constant 1.275000e+02 : f32
    %3 = vector.broadcast %cst_3 : f32 to vector<2x3x16x16xf32>
    %4 = arith.addf %2, %3 : vector<2x3x16x16xf32>
    %c0_4 = arith.constant 0 : index
    %c0_5 = arith.constant 0 : index
    %c0_6 = arith.constant 0 : index
    %c0_7 = arith.constant 0 : index
    %5 = vector.load %arg2[%c0_4, %c0_5, %c0_6, %c0_7] : memref<2x3x16x16xf32, #tpu.memory_space<vmem>>, vector<2x3x16x16xf32>
    %cst_8 = arith.constant 1.275000e+02 : f32
    %6 = vector.broadcast %cst_8 : f32 to vector<2x3x16x16xf32>
    %7 = arith.mulf %5, %6 : vector<2x3x16x16xf32>
    %cst_9 = arith.constant 1.275000e+02 : f32
    %8 = vector.broadcast %cst_9 : f32 to vector<2x3x16x16xf32>
    %9 = arith.addf %7, %8 : vector<2x3x16x16xf32>
    %10 = vector.shape_cast %4 : vector<2x3x16x16xf32> to vector<6x16x16xf32>
    %11 = vector.shape_cast %9 : vector<2x3x16x16xf32> to vector<6x16x16xf32>
    %c0_10 = arith.constant 0 : index
    %c0_11 = arith.constant 0 : index
    %c0_12 = arith.constant 0 : index
    %12 = vector.load %arg6[%c0_10, %c0_11, %c0_12] : memref<24x16x16xf32, #tpu.memory_space<vmem>>, vector<6x16x16xf32>
    tpu.vector_store %arg6[%c0_10, %c0_11, %c0_12], %10 {strides = array<i32>} : memref<24x16x16xf32, #tpu.memory_space<vmem>>, vector<6x16x16xf32>,
    %c6 = arith.constant 6 : index
    %c0_13 = arith.constant 0 : index
    %c0_14 = arith.constant 0 : index
    %13 = vector.load %arg6[%c6, %c0_13, %c0_14] : memref<24x16x16xf32, #tpu.memory_space<vmem>>, vector<6x16x16xf32>
    tpu.vector_store %arg6[%c6, %c0_13, %c0_14], %11 {strides = array<i32>} : memref<24x16x16xf32, #tpu.memory_space<vmem>>, vector<6x16x16xf32>,
    %14 = arith.mulf %10, %11 : vector<6x16x16xf32>
    %c12 = arith.constant 12 : index
    %c0_15 = arith.constant 0 : index
    %c0_16 = arith.constant 0 : index
    %15 = vector.load %arg6[%c12, %c0_15, %c0_16] : memref<24x16x16xf32, #tpu.memory_space<vmem>>, vector<6x16x16xf32>
    tpu.vector_store %arg6[%c12, %c0_15, %c0_16], %14 {strides = array<i32>} : memref<24x16x16xf32, #tpu.memory_space<vmem>>, vector<6x16x16xf32>,
    %16 = arith.mulf %10, %10 : vector<6x16x16xf32>
    %17 = arith.mulf %11, %11 : vector<6x16x16xf32>
    %18 = arith.addf %16, %17 : vector<6x16x16xf32>
    %c18 = arith.constant 18 : index
    %c0_17 = arith.constant 0 : index
    %c0_18 = arith.constant 0 : index
    %19 = vector.load %arg6[%c18, %c0_17, %c0_18] : memref<24x16x16xf32, #tpu.memory_space<vmem>>, vector<6x16x16xf32>
    tpu.vector_store %arg6[%c18, %c0_17, %c0_18], %18 {strides = array<i32>} : memref<24x16x16xf32, #tpu.memory_space<vmem>>, vector<6x16x16xf32>,
    %c0_19 = arith.constant 0 : index
    %c0_20 = arith.constant 0 : index
    %c0_21 = arith.constant 0 : index
    %20 = vector.load %arg6[%c0_19, %c0_20, %c0_21] : memref<24x16x16xf32, #tpu.memory_space<vmem>>, vector<24x16x16xf32>
    %21 = vector.shape_cast %20 : vector<24x16x16xf32> to vector<384x16xf32>
    %c0_22 = arith.constant 0 : index
    %c0_23 = arith.constant 0 : index
    %22 = vector.load %arg4[%c0_22, %c0_23] : memref<16x16xf32, #tpu.memory_space<vmem>>, vector<16x16xf32>
    %cst_24 = arith.constant dense<0.000000e+00> : vector<384x16xf32>
    %23 = tpu.matmul %21, %22, %cst_24 {dimension_numbers = #tpu.dot_dimension_numbers<[1], [0], [0], [1], [0, 0, 1, 1], [], []>} : vector<384x16xf32>, vector<16x16xf32>, vector<384x16xf32> -> vector<384x16xf32>
    %24 = vector.shape_cast %23 : vector<384x16xf32> to vector<24x16x16xf32>
    %25 = tpu.transpose %24, [0, 2, 1] : vector<24x16x16xf32> -> vector<24x16x16xf32>
    %26 = vector.shape_cast %25 : vector<24x16x16xf32> to vector<384x16xf32>
    %c0_25 = arith.constant 0 : index
    %c0_26 = arith.constant 0 : index
    %27 = vector.load %arg3[%c0_25, %c0_26] : memref<16x16xf32, #tpu.memory_space<vmem>>, vector<16x16xf32>
    %cst_27 = arith.constant dense<0.000000e+00> : vector<384x16xf32>
    %28 = tpu.matmul %26, %27, %cst_27 {dimension_numbers = #tpu.dot_dimension_numbers<[1], [0], [0], [1], [0, 0, 1, 1], [], []>} : vector<384x16xf32>, vector<16x16xf32>, vector<384x16xf32> -> vector<384x16xf32>
    %29 = vector.shape_cast %28 : vector<384x16xf32> to vector<24x16x16xf32>
    %30 = vector.extract_strided_slice %29 {offsets = [0, 0, 0], sizes = [6, 16, 16], strides = [1, 1, 1]} : vector<24x16x16xf32> to vector<6x16x16xf32>
    %31 = vector.extract_strided_slice %29 {offsets = [6, 0, 0], sizes = [6, 16, 16], strides = [1, 1, 1]} : vector<24x16x16xf32> to vector<6x16x16xf32>
    %32 = vector.extract_strided_slice %29 {offsets = [12, 0, 0], sizes = [6, 16, 16], strides = [1, 1, 1]} : vector<24x16x16xf32> to vector<6x16x16xf32>
    %33 = vector.extract_strided_slice %29 {offsets = [18, 0, 0], sizes = [6, 16, 16], strides = [1, 1, 1]} : vector<24x16x16xf32> to vector<6x16x16xf32>
    %cst_28 = arith.constant 2.000000e+00 : f32
    %34 = vector.broadcast %cst_28 : f32 to vector<6x16x16xf32>
    %35 = arith.mulf %34, %30 : vector<6x16x16xf32>
    %36 = arith.mulf %35, %31 : vector<6x16x16xf32>
    %37 = arith.mulf %30, %30 : vector<6x16x16xf32>
    %38 = arith.mulf %31, %31 : vector<6x16x16xf32>
    %39 = arith.addf %37, %38 : vector<6x16x16xf32>
    %cst_29 = arith.constant 6.502500e+00 : f32
    %40 = vector.broadcast %cst_29 : f32 to vector<6x16x16xf32>
    %41 = arith.addf %36, %40 : vector<6x16x16xf32>
    %cst_30 = arith.constant 6.502500e+00 : f32
    %42 = vector.broadcast %cst_30 : f32 to vector<6x16x16xf32>
    %43 = arith.addf %39, %42 : vector<6x16x16xf32>
    %44 = arith.divf %41, %43 : vector<6x16x16xf32>
    %cst_31 = arith.constant 2.000000e+00 : f32
    %45 = vector.broadcast %cst_31 : f32 to vector<6x16x16xf32>
    %46 = arith.mulf %45, %32 : vector<6x16x16xf32>
    %47 = arith.subf %46, %36 : vector<6x16x16xf32>
    %cst_32 = arith.constant 5.852250e+01 : f32
    %48 = vector.broadcast %cst_32 : f32 to vector<6x16x16xf32>
    %49 = arith.addf %47, %48 : vector<6x16x16xf32>
    %50 = arith.subf %33, %39 : vector<6x16x16xf32>
    %cst_33 = arith.constant 5.852250e+01 : f32
    %51 = vector.broadcast %cst_33 : f32 to vector<6x16x16xf32>
    %52 = arith.addf %50, %51 : vector<6x16x16xf32>
    %53 = arith.divf %49, %52 : vector<6x16x16xf32>
    %54 = arith.mulf %44, %53 : vector<6x16x16xf32>
    %55 = vector.shape_cast %54 : vector<6x16x16xf32> to vector<2x3x16x16xf32>
    %cst_34 = arith.constant dense<0.000000e+00> : vector<2x3x16xf32>
    %56 = vector.multi_reduction <add>, %55, %cst_34 [3] : vector<2x3x16x16xf32> to vector<2x3x16xf32>
    %57 = vector.shape_cast %56 : vector<2x3x16xf32> to vector<2x3x16x1xf32>
    %cst_35 = arith.constant dense<0.000000e+00> : vector<2x3x1xf32>
    %58 = vector.multi_reduction <add>, %57, %cst_35 [2] : vector<2x3x16x1xf32> to vector<2x3x1xf32>
    %59 = vector.shape_cast %58 : vector<2x3x1xf32> to vector<2x3x1x1xf32>
    %cst_36 = arith.constant dense<0.000000e+00> : vector<2x1x1xf32>
    %60 = vector.multi_reduction <add>, %59, %cst_36 [1] : vector<2x3x1x1xf32> to vector<2x1x1xf32>
    %cst_37 = arith.constant 0.00130208337 : f32
    %61 = vector.broadcast %cst_37 : f32 to vector<2x1x1xf32>
    %62 = arith.mulf %60, %61 : vector<2x1x1xf32>
    %c0_38 = arith.constant 0 : index
    %c0_39 = arith.constant 0 : index
    %c0_40 = arith.constant 0 : index
    %63 = vector.load %arg5[%c0_38, %c0_39, %c0_40] : memref<2x1x1xf32, #tpu.memory_space<vmem>>, vector<2x1x1xf32>
    tpu.vector_store %arg5[%c0_38, %c0_39, %c0_40], %62 {strides = array<i32>} : memref<2x1x1xf32, #tpu.memory_space<vmem>>, vector<2x1x1xf32>,
    return
  }
  func.func @transform_0(%arg0: i32) -> (i32, i32, i32, i32) {
    %c0_i32 = arith.constant 0 : i32
    %c0_i32_0 = arith.constant 0 : i32
    %c0_i32_1 = arith.constant 0 : i32
    %c0_i32_2 = arith.constant 0 : i32
    return %arg0, %c0_i32, %c0_i32_0, %c0_i32_1 : i32, i32, i32, i32
  }
  func.func @transform_1(%arg0: i32) -> (i32, i32, i32, i32) {
    %c0_i32 = arith.constant 0 : i32
    %c0_i32_0 = arith.constant 0 : i32
    %c0_i32_1 = arith.constant 0 : i32
    %c0_i32_2 = arith.constant 0 : i32
    return %arg0, %c0_i32, %c0_i32_0, %c0_i32_1 : i32, i32, i32, i32
  }
  func.func @transform_2(%arg0: i32) -> (i32, i32) {
    %c0_i32 = arith.constant 0 : i32
    %c0_i32_0 = arith.constant 0 : i32
    %c0_i32_1 = arith.constant 0 : i32
    return %c0_i32, %c0_i32_0 : i32, i32
  }
  func.func @transform_3(%arg0: i32) -> (i32, i32) {
    %c0_i32 = arith.constant 0 : i32
    %c0_i32_0 = arith.constant 0 : i32
    %c0_i32_1 = arith.constant 0 : i32
    return %c0_i32, %c0_i32_0 : i32, i32
  }
  func.func @transform_4(%arg0: i32) -> (i32, i32, i32) {
    %c0_i32 = arith.constant 0 : i32
    %c0_i32_0 = arith.constant 0 : i32
    %c0_i32_1 = arith.constant 0 : i32
    return %arg0, %c0_i32, %c0_i32_0 : i32, i32, i32
  }
}

</mosaic_0001>

<llo_original>
// kernel: tpu_custom_call.1
$region0: #{tpu_custom_call.1}
  #allocation0 [shape = 'u32[]', space=smem, size = 0x4, offset = 0x4, fixed_abs, tag = 'smem constant byte address 0x4 - core index']
  #allocation1 [shape = 'u32[72,128]{1,0:T(1,128)}', space=vmem, size = 0x9000, scoped, tag = 'internal scratch']
  #allocation2 [shape = 'f32[24,16,16]{2,1,0:T(8,128)}', space=vmem, size = 0x30000, scoped, tag = 'scratch operand']
  %s0 = inlined_call_operand.hbm [shape: f32[4,3,16,16], index: 0, kind: input, shape index: {}]
  %s1 = inlined_call_operand.hbm [shape: f32[4,3,16,16], index: 1, kind: input, shape index: {}]
  %s2 = inlined_call_operand.hbm [shape: f32[16,16], index: 2, kind: input, shape index: {}]
  %s3 = inlined_call_operand.hbm [shape: f32[16,16], index: 3, kind: input, shape index: {}]
  %s4 = inlined_call_operand.vmem [shape: f32[4,1,1], index: 4, kind: output, shape index: {}]
  %s5 = sld [smem:[#allocation0]]
  $region65: #{tpu_custom_call.1} parent=0
    _
  %s7 = ssub.s32 1, %s5
  %s8 = scalar_select 0, %s7, %s5
  $region1: #{tpu_custom_call.1} parent=0
    #allocation3 [shape = 'u8[98304]{0}', space=vmem, size = 0x18000, scoped, tag = 'input window, operand 0']
    #allocation4 [shape = 's32[2]{0}', space=sflag, size = 0x8, scoped, tag = 'scoped memory for tpu_custom_call.1']
    #allocation5 [shape = 'u8[98304]{0}', space=vmem, size = 0x18000, scoped, tag = 'input window, operand 1']
    #allocation6 [shape = 's32[2]{0}', space=sflag, size = 0x8, scoped, tag = 'scoped memory for tpu_custom_call.1']
    #allocation7 [shape = 'u8[8192]{0}', space=vmem, size = 0x2000, scoped, tag = 'input window, operand 2, single buffered']
    #allocation8 [shape = 'u8[8192]{0}', space=vmem, size = 0x2000, scoped, tag = 'input window, operand 3, single buffered']
    #allocation9 [shape = 's32[1]{0}', space=sflag, size = 0x4, scoped, tag = 'scoped memory for tpu_custom_call.1']
    %9 = vsyncpa [#allocation4], 0
    %s10 = scalar_lea.sflag [#allocation4], 1
    %11 = vsyncpa %s10, 0
    %12 = vsyncpa [#allocation6], 0
    %s13 = scalar_lea.sflag [#allocation6], 1
    %14 = vsyncpa %s13, 0
    %15 = vsyncpa [#allocation9], 0
    loop: start=0, step=1, limit=4
    $region2: #{tpu_custom_call.1} parent=1 // loop_pre_header
      _
    $region3: #{tpu_custom_call.1} parent=1 // loop_header
      %s17 = sphi 0, %s21
      %p18 = scmp.ge.s32.totalorder %s17, 4
      %s27 = sphi 0, %s29
      %s30 = sphi 0, %s27
      %s31 = sphi 0, %s30
      %s47 = sphi 0, %s31
      %s53 = sphi 0, %s55
      %s56 = sphi 0, %s53
      %s57 = sphi 0, %s56
      %s73 = sphi 0, %s57
      %s77 = sphi 0, %s77
      %s79 = sphi 0, %s77
      %s80 = sphi 0, %s79
      %s94 = sphi 0, %s80
      %s98 = sphi 0, %s98
      %s100 = sphi 0, %s98
      %s101 = sphi 0, %s100
      %s115 = sphi 0, %s101
      %s121 = sphi 0, %s123
      %s124 = sphi 0, %s121
      %s125 = sphi 0, %s124
      %s141 = sphi 0, %s125
    $region4: #{tpu_custom_call.1} parent=1 // loop_header_branch
      %20 = sbr.rel (%p18) target = $region8
    $region5: #{tpu_custom_call.1} parent=1 // loop_body
      %s22 = ssub.s32 %s17, 1
      %s23 = ssub.s32 %s17, 2
      %s24 = sadd.s32 %s17, 1
      %s25 = ssub.s32 %s17, %s24
      %p26 = scmp.eq.s32.totalorder %s25, 0
      %s28 = sadd.s32 %s27, 1
      %s29 = scalar_select %p26, %s27, %s28
      %p32 = pneg %p26
      %p33 = scmp.eq.s32.totalorder %s17, 1
      %p34 = por %p32, %p33
      %p35 = scmp.ne.s32.totalorder %s27, %s30
      %p36 = scmp.eq.s32.totalorder %s17, 0
      %p37 = por %p35, %p36
      %p38 = scmp.ne.s32.totalorder %s27, %s30
      %p39 = scmp.eq.s32.totalorder %s22, 1
      %p40 = por %p38, %p39
      %p41 = scmp.ne.s32.totalorder %s30, %s31
      %p42 = scmp.eq.s32.totalorder %s22, 0
      %p43 = por %p41, %p42
      %p44 = scmp.ne.s32.totalorder %s30, %s31
      %p45 = scmp.eq.s32.totalorder %s23, 1
      %p46 = por %p44, %p45
      %p48 = scmp.ne.s32.totalorder %s31, %s47
      %p49 = scmp.eq.s32.totalorder %s23, 0
      %p50 = por %p48, %p49
      %s51 = ssub.s32 %s17, %s24
      %p52 = scmp.eq.s32.totalorder %s51, 0
      %s54 = sadd.s32 %s53, 1
      %s55 = scalar_select %p52, %s53, %s54
      %p58 = pneg %p52
      %p59 = scmp.eq.s32.totalorder %s17, 1
      %p60 = por %p58, %p59
      %p61 = scmp.ne.s32.totalorder %s53, %s56
      %p62 = scmp.eq.s32.totalorder %s17, 0
      %p63 = por %p61, %p62
      %p64 = scmp.ne.s32.totalorder %s53, %s56
      %p65 = scmp.eq.s32.totalorder %s22, 1
      %p66 = por %p64, %p65
      %p67 = scmp.ne.s32.totalorder %s56, %s57
      %p68 = scmp.eq.s32.totalorder %s22, 0
      %p69 = por %p67, %p68
      %p70 = scmp.ne.s32.totalorder %s56, %s57
      %p71 = scmp.eq.s32.totalorder %s23, 1
      %p72 = por %p70, %p71
      %p74 = scmp.ne.s32.totalorder %s57, %s73
      %p75 = scmp.eq.s32.totalorder %s23, 0
      %p76 = por %p74, %p75
      %s78 = sadd.s32 %s77, 1
      %p81 = scmp.eq.s32.totalorder %s17, 1
      %p82 = scmp.ne.s32.totalorder %s77, %s79
      %p83 = scmp.eq.s32.totalorder %s17, 0
      %p84 = por %p82, %p83
      %p85 = scmp.ne.s32.totalorder %s77, %s79
      %p86 = scmp.eq.s32.totalorder %s22, 1
      %p87 = por %p85, %p86
      %p88 = scmp.ne.s32.totalorder %s79, %s80
      %p89 = scmp.eq.s32.totalorder %s22, 0
      %p90 = por %p88, %p89
      %p91 = scmp.ne.s32.totalorder %s79, %s80
      %p92 = scmp.eq.s32.totalorder %s23, 1
      %p93 = por %p91, %p92
      %p95 = scmp.ne.s32.totalorder %s80, %s94
      %p96 = scmp.eq.s32.totalorder %s23, 0
      %p97 = por %p95, %p96
      %s99 = sadd.s32 %s98, 1
      %p102 = scmp.eq.s32.totalorder %s17, 1
      %p103 = scmp.ne.s32.totalorder %s98, %s100
      %p104 = scmp.eq.s32.totalorder %s17, 0
      %p105 = por %p103, %p104
      %p106 = scmp.ne.s32.totalorder %s98, %s100
      %p107 = scmp.eq.s32.totalorder %s22, 1
      %p108 = por %p106, %p107
      %p109 = scmp.ne.s32.totalorder %s100, %s101
      %p110 = scmp.eq.s32.totalorder %s22, 0
      %p111 = por %p109, %p110
      %p112 = scmp.ne.s32.totalorder %s100, %s101
      %p113 = scmp.eq.s32.totalorder %s23, 1
      %p114 = por %p112, %p113
      %p116 = scmp.ne.s32.totalorder %s101, %s115
      %p117 = scmp.eq.s32.totalorder %s23, 0
      %p118 = por %p116, %p117
      %s119 = ssub.s32 %s17, %s24
      %p120 = scmp.eq.s32.totalorder %s119, 0
      %s122 = sadd.s32 %s121, 1
      %s123 = scalar_select %p120, %s121, %s122
      %p126 = pneg %p120
      %p127 = scmp.eq.s32.totalorder %s17, 1
      %p128 = por %p126, %p127
      %p129 = scmp.ne.s32.totalorder %s121, %s124
      %p130 = scmp.eq.s32.totalorder %s17, 0
      %p131 = por %p129, %p130
      %p132 = scmp.ne.s32.totalorder %s121, %s124
      %p133 = scmp.eq.s32.totalorder %s22, 1
      %p134 = por %p132, %p133
      %p135 = scmp.ne.s32.totalorder %s124, %s125
      %p136 = scmp.eq.s32.totalorder %s22, 0
      %p137 = por %p135, %p136
      %p138 = scmp.ne.s32.totalorder %s124, %s125
      %p139 = scmp.eq.s32.totalorder %s23, 1
      %p140 = por %p138, %p139
      %p142 = scmp.ne.s32.totalorder %s125, %s141
      %p143 = scmp.eq.s32.totalorder %s23, 0
      %p144 = por %p142, %p143
      %p145 = scmp.le.s32.totalorder 1, %s17
      %p146 = scmp.lt.s32.totalorder %s17, 3
      %p147 = pnand %p145, %p146
      %p148 = pneg %p147
      // Predicated region
      $region9: #{tpu_custom_call.1} parent=5 // pred_check
        _
      $region10: #{tpu_custom_call.1} parent=5 // pred_check_branch
        %150 = sbr.rel (%p147) target = $region12
      $region11: #{tpu_custom_call.1} parent=5 // pred_region
        %s151 = ssub.s32 %s17, 1
        // Predicated region
        $region13: #{tpu_custom_call.1} parent=11 // pred_check
          %p152 = pneg %p90
        $region14: #{tpu_custom_call.1} parent=11 // pred_check_branch
          %154 = sbr.rel (%p152) target = $region16
        $region15: #{tpu_custom_call.1} parent=11 // pred_region
          %156 = vsyncadd [#allocation6], 0
          %s157 = sshll.u32 %s2, 4
          %s158 = int_to_ptr.hbm [resolvable:$true] %s157
          %s159 = sshll.u32 [#allocation7], 4
          %s160 = int_to_ptr.vmem [resolvable:$true] %s159
          %165 = dma.hbm_to_vmem [thread:$0]  %s158, 256, %s160, [#allocation6], 128, 128, 8
        $region16: #{tpu_custom_call.1} parent=11 // pred_fallthru
          _
        // Predicated region
        $region17: #{tpu_custom_call.1} parent=11 // pred_check
          %p166 = pneg %p111
        $region18: #{tpu_custom_call.1} parent=11 // pred_check_branch
          %168 = sbr.rel (%p166) target = $region20
        $region19: #{tpu_custom_call.1} parent=11 // pred_region
          %170 = vsyncadd [#allocation9], 0
          %s171 = sshll.u32 %s3, 4
          %s172 = int_to_ptr.hbm [resolvable:$true] %s171
          %s173 = sshll.u32 [#allocation8], 4
          %s174 = int_to_ptr.vmem [resolvable:$true] %s173
          %179 = dma.hbm_to_vmem [thread:$0]  %s172, 256, %s174, [#allocation9], 128, 128, 8
        $region20: #{tpu_custom_call.1} parent=11 // pred_fallthru
          _
      $region12: #{tpu_custom_call.1} parent=5 // pred_fallthru
        _
      %p180 = scmp.lt.s32.totalorder %s17, 2
      // Predicated region
      $region21: #{tpu_custom_call.1} parent=5 // pred_check
        %p181 = pneg %p180
      $region22: #{tpu_custom_call.1} parent=5 // pred_check_branch
        %183 = sbr.rel (%p181) target = $region24
      $region23: #{tpu_custom_call.1} parent=5 // pred_region
        // Predicated region
        $region25: #{tpu_custom_call.1} parent=23 // pred_check
          %p184 = pneg %p37
        $region26: #{tpu_custom_call.1} parent=23 // pred_check_branch
          %186 = sbr.rel (%p184) target = $region28
        $region27: #{tpu_custom_call.1} parent=23 // pred_region
          %s187 = sand.u32 %s27, 1
          %s188 = scalar_lea.sflag [#allocation4], %s187
          %s189 = sand.u32 %s27, 1
          %s190 = smul.addr %s189, 96
          %s191 = scalar_lea.vmem [#allocation3], %s190
          %s192 = smul.u32 2, %s17
          %194 = vsyncadd %s188, 0
          %s195 = smul.addr %s192, 6
          %s196 = smul.addr %s195, 8
          %s197 = scalar_lea.hbm %s0, %s196
          %s198 = sshll.u32 %s197, 4
          %s199 = int_to_ptr.hbm [resolvable:$true] %s198
          %s200 = sshll.u32 %s191, 4
          %s201 = int_to_ptr.vmem [resolvable:$true] %s200
          %206 = dma.hbm_to_vmem [thread:$0]  %s199, 1536, %s201, %s188, 128, 128, 8
        $region28: #{tpu_custom_call.1} parent=23 // pred_fallthru
          _
        // Predicated region
        $region29: #{tpu_custom_call.1} parent=23 // pred_check
          %p207 = pneg %p63
        $region30: #{tpu_custom_call.1} parent=23 // pred_check_branch
          %209 = sbr.rel (%p207) target = $region32
        $region31: #{tpu_custom_call.1} parent=23 // pred_region
          %s210 = sand.u32 %s17, 1
          %s211 = scalar_lea.sflag [#allocation6], %s210
          %s212 = sand.u32 %s53, 1
          %s213 = smul.addr %s212, 96
          %s214 = scalar_lea.vmem [#allocation5], %s213
          %s215 = smul.u32 2, %s17
          %217 = vsyncadd %s211, 0
          %s218 = smul.addr %s215, 6
          %s219 = smul.addr %s218, 8
          %s220 = scalar_lea.hbm %s1, %s219
          %s221 = sshll.u32 %s220, 4
          %s222 = int_to_ptr.hbm [resolvable:$true] %s221
          %s223 = sshll.u32 %s214, 4
          %s224 = int_to_ptr.vmem [resolvable:$true] %s223
          %229 = dma.hbm_to_vmem [thread:$0]  %s222, 1536, %s224, %s211, 128, 128, 8
        $region32: #{tpu_custom_call.1} parent=23 // pred_fallthru
          _
      $region24: #{tpu_custom_call.1} parent=5 // pred_fallthru
        _
      %p230 = scmp.le.s32.totalorder 1, %s17
      %p231 = scmp.lt.s32.totalorder %s17, 3
      %p232 = pnand %p230, %p231
      %p233 = pneg %p232
      // Predicated region
      $region33: #{tpu_custom_call.1} parent=5 // pred_check
        _
      $region34: #{tpu_custom_call.1} parent=5 // pred_check_branch
        %235 = sbr.rel (%p232) target = $region36
      $region35: #{tpu_custom_call.1} parent=5 // pred_region
        %s236 = ssub.s32 %s17, 1
        %s237 = sand.u32 %s30, 1
        %s238 = scalar_lea.sflag [#allocation4], %s237
        %s239 = sand.u32 %s30, 1
        %s240 = smul.addr %s239, 96
        %s241 = scalar_lea.vmem [#allocation3], %s240
        // Predicated region
        $region37: #{tpu_custom_call.1} parent=35 // pred_check
          %p242 = pneg %p43
        $region38: #{tpu_custom_call.1} parent=35 // pred_check_branch
          %244 = sbr.rel (%p242) target = $region40
        $region39: #{tpu_custom_call.1} parent=35 // pred_region
          %246 = dma.done %s238, 1536
        $region40: #{tpu_custom_call.1} parent=35 // pred_fallthru
          _
        %s247 = sand.u32 %s22, 1
        %s248 = scalar_lea.sflag [#allocation6], %s247
        %s249 = sand.u32 %s56, 1
        %s250 = smul.addr %s249, 96
        %s251 = scalar_lea.vmem [#allocation5], %s250
        // Predicated region
        $region41: #{tpu_custom_call.1} parent=35 // pred_check
          %p252 = pneg %p69
        $region42: #{tpu_custom_call.1} parent=35 // pred_check_branch
          %254 = sbr.rel (%p252) target = $region44
        $region43: #{tpu_custom_call.1} parent=35 // pred_region
          %256 = dma.done %s248, 1536
        $region44: #{tpu_custom_call.1} parent=35 // pred_fallthru
          _
        // Predicated region
        $region45: #{tpu_custom_call.1} parent=35 // pred_check
          %p257 = pneg %p90
        $region46: #{tpu_custom_call.1} parent=35 // pred_check_branch
          %259 = sbr.rel (%p257) target = $region48
        $region47: #{tpu_custom_call.1} parent=35 // pred_region
          %261 = dma.done [#allocation6], 256
        $region48: #{tpu_custom_call.1} parent=35 // pred_fallthru
          _
        // Predicated region
        $region49: #{tpu_custom_call.1} parent=35 // pred_check
          %p262 = pneg %p111
        $region50: #{tpu_custom_call.1} parent=35 // pred_check_branch
          %264 = sbr.rel (%p262) target = $region52
        $region51: #{tpu_custom_call.1} parent=35 // pred_region
          %266 = dma.done [#allocation9], 256
        $region52: #{tpu_custom_call.1} parent=35 // pred_fallthru
          _
        %s267 = sand.u32 %s30, 1
        %s268 = scalar_lea.sflag [#allocation4], %s267
        %s269 = sand.u32 %s30, 1
        %s270 = smul.addr %s269, 96
        %s271 = scalar_lea.vmem [#allocation3], %s270
        %p272 = pneg %p43
        %p273 = pneg %p40
        %s274 = sand.u32 %s22, 1
        %s275 = scalar_lea.sflag [#allocation6], %s274
        %s276 = sand.u32 %s56, 1
        %s277 = smul.addr %s276, 96
        %s278 = scalar_lea.vmem [#allocation5], %s277
        %p279 = pneg %p69
        %p280 = pneg %p66
        %p281 = pneg %p90
        %p282 = pneg %p87
        %p283 = pneg %p111
        %p284 = pneg %p108
        %p285 = pneg %p137
        %p286 = pneg %p134
        %s287 = smul.u32 2, %s22
        %p288 = scmp.lt.s32.totalorder %s287, 3
        %s289 = scalar_select %p288, %s287, 3
        %s290 = scalar_lea.vmem %s4, %s289
        %s291 = smul.u32 2, %s22
        %s292 = smul.u32 2, %s22
        %s293 = smul.u32 2, %s22
        %p294 = scmp.lt.s32.totalorder %s293, 3
        %s295 = scalar_select %p294, %s293, 3
        %s296 = scalar_lea.vmem %s4, %s295
        %s297 = smul.u32 2, %s22
        %v298 = vld [vmem:[%s241] sm:$0xff]
        %v299 = vld [vmem:[%s241 + $0x8] sm:$0xff]
        %v300 = vld [vmem:[%s241 + $0x10] sm:$0xff]
        %v301 = vld [vmem:[%s241 + $0x18] sm:$0xff]
        %v302 = vld [vmem:[%s241 + $0x20] sm:$0xff]
        %v303 = vld [vmem:[%s241 + $0x28] sm:$0xff]
        %v304 = vld [vmem:[%s241 + $0x30] sm:$0xff]
        %v305 = vld [vmem:[%s241 + $0x38] sm:$0xff]
        %v306 = vld [vmem:[%s241 + $0x40] sm:$0xff]
        %v307 = vld [vmem:[%s241 + $0x48] sm:$0xff]
        %v308 = vld [vmem:[%s241 + $0x50] sm:$0xff]
        %v309 = vld [vmem:[%s241 + $0x58] sm:$0xff]
        %v310 = vmul.f32 %v298, 127.5
        %v311 = vmul.f32 %v299, 127.5
        %v312 = vmul.f32 %v300, 127.5
        %v313 = vmul.f32 %v301, 127.5
        %v314 = vmul.f32 %v302, 127.5
        %v315 = vmul.f32 %v303, 127.5
        %v316 = vmul.f32 %v304, 127.5
        %v317 = vmul.f32 %v305, 127.5
        %v318 = vmul.f32 %v306, 127.5
        %v319 = vmul.f32 %v307, 127.5
        %v320 = vmul.f32 %v308, 127.5
        %v321 = vmul.f32 %v309, 127.5
        %v322 = vadd.f32 %v310, 127.5
        %v323 = vadd.f32 %v311, 127.5
        %v324 = vadd.f32 %v312, 127.5
        %v325 = vadd.f32 %v313, 127.5
        %v326 = vadd.f32 %v314, 127.5
        %v327 = vadd.f32 %v315, 127.5
        %v328 = vadd.f32 %v316, 127.5
        %v329 = vadd.f32 %v317, 127.5
        %v330 = vadd.f32 %v318, 127.5
        %v331 = vadd.f32 %v319, 127.5
        %v332 = vadd.f32 %v320, 127.5
        %v333 = vadd.f32 %v321, 127.5
        %v334 = vld [vmem:[%s251] sm:$0xff]
        %v335 = vld [vmem:[%s251 + $0x8] sm:$0xff]
        %v336 = vld [vmem:[%s251 + $0x10] sm:$0xff]
        %v337 = vld [vmem:[%s251 + $0x18] sm:$0xff]
        %v338 = vld [vmem:[%s251 + $0x20] sm:$0xff]
        %v339 = vld [vmem:[%s251 + $0x28] sm:$0xff]
        %v340 = vld [vmem:[%s251 + $0x30] sm:$0xff]
        %v341 = vld [vmem:[%s251 + $0x38] sm:$0xff]
        %v342 = vld [vmem:[%s251 + $0x40] sm:$0xff]
        %v343 = vld [vmem:[%s251 + $0x48] sm:$0xff]
        %v344 = vld [vmem:[%s251 + $0x50] sm:$0xff]
        %v345 = vld [vmem:[%s251 + $0x58] sm:$0xff]
        %v346 = vmul.f32 %v334, 127.5
        %v347 = vmul.f32 %v335, 127.5
        %v348 = vmul.f32 %v336, 127.5
        %v349 = vmul.f32 %v337, 127.5
        %v350 = vmul.f32 %v338, 127.5
        %v351 = vmul.f32 %v339, 127.5
        %v352 = vmul.f32 %v340, 127.5
        %v353 = vmul.f32 %v341, 127.5
        %v354 = vmul.f32 %v342, 127.5
        %v355 = vmul.f32 %v343, 127.5
        %v356 = vmul.f32 %v344, 127.5
        %v357 = vmul.f32 %v345, 127.5
        %v358 = vadd.f32 %v346, 127.5
        %v359 = vadd.f32 %v347, 127.5
        %v360 = vadd.f32 %v348, 127.5
        %v361 = vadd.f32 %v349, 127.5
        %v362 = vadd.f32 %v350, 127.5
        %v363 = vadd.f32 %v351, 127.5
        %v364 = vadd.f32 %v352, 127.5
        %v365 = vadd.f32 %v353, 127.5
        %v366 = vadd.f32 %v354, 127.5
        %v367 = vadd.f32 %v355, 127.5
        %v368 = vadd.f32 %v356, 127.5
        %v369 = vadd.f32 %v357, 127.5
        %vm370 = vcmask 130048
        %371 = vst.msk [vmem:[#allocation2] sm:$0xff] %vm370, %v322
        %372 = vst.msk [vmem:[#allocation2 + $0x8] sm:$0xff] %vm370, %v323
        %373 = vst.msk [vmem:[#allocation2 + $0x10] sm:$0xff] %vm370, %v324
        %374 = vst.msk [vmem:[#allocation2 + $0x18] sm:$0xff] %vm370, %v325
        %375 = vst.msk [vmem:[#allocation2 + $0x20] sm:$0xff] %vm370, %v326
        %376 = vst.msk [vmem:[#allocation2 + $0x28] sm:$0xff] %vm370, %v327
        %377 = vst.msk [vmem:[#allocation2 + $0x30] sm:$0xff] %vm370, %v328
        %378 = vst.msk [vmem:[#allocation2 + $0x38] sm:$0xff] %vm370, %v329
        %379 = vst.msk [vmem:[#allocation2 + $0x40] sm:$0xff] %vm370, %v330
        %380 = vst.msk [vmem:[#allocation2 + $0x48] sm:$0xff] %vm370, %v331
        %381 = vst.msk [vmem:[#allocation2 + $0x50] sm:$0xff] %vm370, %v332
        %382 = vst.msk [vmem:[#allocation2 + $0x58] sm:$0xff] %vm370, %v333
        %s383 = scalar_lea.vmem [#allocation2], 96
        %384 = vst.msk [vmem:[%s383] sm:$0xff] %vm370, %v358
        %385 = vst.msk [vmem:[%s383 + $0x8] sm:$0xff] %vm370, %v359
        %386 = vst.msk [vmem:[%s383 + $0x10] sm:$0xff] %vm370, %v360
        %387 = vst.msk [vmem:[%s383 + $0x18] sm:$0xff] %vm370, %v361
        %388 = vst.msk [vmem:[%s383 + $0x20] sm:$0xff] %vm370, %v362
        %389 = vst.msk [vmem:[%s383 + $0x28] sm:$0xff] %vm370, %v363
        %390 = vst.msk [vmem:[%s383 + $0x30] sm:$0xff] %vm370, %v364
        %391 = vst.msk [vmem:[%s383 + $0x38] sm:$0xff] %vm370, %v365
        %392 = vst.msk [vmem:[%s383 + $0x40] sm:$0xff] %vm370, %v366
        %393 = vst.msk [vmem:[%s383 + $0x48] sm:$0xff] %vm370, %v367
        %394 = vst.msk [vmem:[%s383 + $0x50] sm:$0xff] %vm370, %v368
        %395 = vst.msk [vmem:[%s383 + $0x58] sm:$0xff] %vm370, %v369
        %v396 = vmul.f32 %v322, %v358
        %v397 = vmul.f32 %v323, %v359
        %v398 = vmul.f32 %v324, %v360
        %v399 = vmul.f32 %v325, %v361
        %v400 = vmul.f32 %v326, %v362
        %v401 = vmul.f32 %v327, %v363
        %v402 = vmul.f32 %v328, %v364
        %v403 = vmul.f32 %v329, %v365
        %v404 = vmul.f32 %v330, %v366
        %v405 = vmul.f32 %v331, %v367
        %v406 = vmul.f32 %v332, %v368
        %v407 = vmul.f32 %v333, %v369
        %s408 = scalar_lea.vmem [#allocation2], 192
        %409 = vst.msk [vmem:[%s408] sm:$0xff] %vm370, %v396
        %410 = vst.msk [vmem:[%s408 + $0x8] sm:$0xff] %vm370, %v397
        %411 = vst.msk [vmem:[%s408 + $0x10] sm:$0xff] %vm370, %v398
        %412 = vst.msk [vmem:[%s408 + $0x18] sm:$0xff] %vm370, %v399
        %413 = vst.msk [vmem:[%s408 + $0x20] sm:$0xff] %vm370, %v400
        %414 = vst.msk [vmem:[%s408 + $0x28] sm:$0xff] %vm370, %v401
        %415 = vst.msk [vmem:[%s408 + $0x30] sm:$0xff] %vm370, %v402
        %416 = vst.msk [vmem:[%s408 + $0x38] sm:$0xff] %vm370, %v403
        %417 = vst.msk [vmem:[%s408 + $0x40] sm:$0xff] %vm370, %v404
        %418 = vst.msk [vmem:[%s408 + $0x48] sm:$0xff] %vm370, %v405
        %419 = vst.msk [vmem:[%s408 + $0x50] sm:$0xff] %vm370, %v406
        %420 = vst.msk [vmem:[%s408 + $0x58] sm:$0xff] %vm370, %v407
        %v421 = vmul.f32 %v322, %v322
        %v422 = vmul.f32 %v323, %v323
        %v423 = vmul.f32 %v324, %v324
        %v424 = vmul.f32 %v325, %v325
        %v425 = vmul.f32 %v326, %v326
        %v426 = vmul.f32 %v327, %v327
        %v427 = vmul.f32 %v328, %v328
        %v428 = vmul.f32 %v329, %v329
        %v429 = vmul.f32 %v330, %v330
        %v430 = vmul.f32 %v331, %v331
        %v431 = vmul.f32 %v332, %v332
        %v432 = vmul.f32 %v333, %v333
        %v433 = vmul.f32 %v358, %v358
        %v434 = vmul.f32 %v359, %v359
        %v435 = vmul.f32 %v360, %v360
        %v436 = vmul.f32 %v361, %v361
        %v437 = vmul.f32 %v362, %v362
        %v438 = vmul.f32 %v363, %v363
        %v439 = vmul.f32 %v364, %v364
        %v440 = vmul.f32 %v365, %v365
        %v441 = vmul.f32 %v366, %v366
        %v442 = vmul.f32 %v367, %v367
        %v443 = vmul.f32 %v368, %v368
        %v444 = vmul.f32 %v369, %v369
        %v445 = vadd.f32 %v421, %v433
        %v446 = vadd.f32 %v422, %v434
        %v447 = vadd.f32 %v423, %v435
        %v448 = vadd.f32 %v424, %v436
        %v449 = vadd.f32 %v425, %v437
        %v450 = vadd.f32 %v426, %v438
        %v451 = vadd.f32 %v427, %v439
        %v452 = vadd.f32 %v428, %v440
        %v453 = vadd.f32 %v429, %v441
        %v454 = vadd.f32 %v430, %v442
        %v455 = vadd.f32 %v431, %v443
        %v456 = vadd.f32 %v432, %v444
        %s457 = scalar_lea.vmem [#allocation2], 288
        %458 = vst.msk [vmem:[%s457] sm:$0xff] %vm370, %v445
        %459 = vst.msk [vmem:[%s457 + $0x8] sm:$0xff] %vm370, %v446
        %460 = vst.msk [vmem:[%s457 + $0x10] sm:$0xff] %vm370, %v447
        %461 = vst.msk [vmem:[%s457 + $0x18] sm:$0xff] %vm370, %v448
        %462 = vst.msk [vmem:[%s457 + $0x20] sm:$0xff] %vm370, %v449
        %463 = vst.msk [vmem:[%s457 + $0x28] sm:$0xff] %vm370, %v450
        %464 = vst.msk [vmem:[%s457 + $0x30] sm:$0xff] %vm370, %v451
        %465 = vst.msk [vmem:[%s457 + $0x38] sm:$0xff] %vm370, %v452
        %466 = vst.msk [vmem:[%s457 + $0x40] sm:$0xff] %vm370, %v453
        %467 = vst.msk [vmem:[%s457 + $0x48] sm:$0xff] %vm370, %v454
        %468 = vst.msk [vmem:[%s457 + $0x50] sm:$0xff] %vm370, %v455
        %469 = vst.msk [vmem:[%s457 + $0x58] sm:$0xff] %vm370, %v456
        %v470 = vld [vmem:[#allocation2] sm:$0xff]
        %v471 = vld [vmem:[#allocation2 + $0x8] sm:$0xff]
        %v472 = vld [vmem:[#allocation2 + $0x10] sm:$0xff]
        %v473 = vld [vmem:[#allocation2 + $0x18] sm:$0xff]
        %v474 = vld [vmem:[#allocation2 + $0x20] sm:$0xff]
        %v475 = vld [vmem:[#allocation2 + $0x28] sm:$0xff]
        %v476 = vld [vmem:[#allocation2 + $0x30] sm:$0xff]
        %v477 = vld [vmem:[#allocation2 + $0x38] sm:$0xff]
        %v478 = vld [vmem:[#allocation2 + $0x40] sm:$0xff]
        %v479 = vld [vmem:[#allocation2 + $0x48] sm:$0xff]
        %v480 = vld [vmem:[#allocation2 + $0x50] sm:$0xff]
        %v481 = vld [vmem:[#allocation2 + $0x58] sm:$0xff]
        %v482 = vld [vmem:[#allocation2 + $0x60] sm:$0xff]
        %v483 = vld [vmem:[#allocation2 + $0x68] sm:$0xff]
        %v484 = vld [vmem:[#allocation2 + $0x70] sm:$0xff]
        %v485 = vld [vmem:[#allocation2 + $0x78] sm:$0xff]
        %v486 = vld [vmem:[#allocation2 + $0x80] sm:$0xff]
        %v487 = vld [vmem:[#allocation2 + $0x88] sm:$0xff]
        %v488 = vld [vmem:[#allocation2 + $0x90] sm:$0xff]
        %v489 = vld [vmem:[#allocation2 + $0x98] sm:$0xff]
        %v490 = vld [vmem:[#allocation2 + $0xa0] sm:$0xff]
        %v491 = vld [vmem:[#allocation2 + $0xa8] sm:$0xff]
        %v492 = vld [vmem:[#allocation2 + $0xb0] sm:$0xff]
        %v493 = vld [vmem:[#allocation2 + $0xb8] sm:$0xff]
        %v494 = vld [vmem:[#allocation2 + $0xc0] sm:$0xff]
        %v495 = vld [vmem:[#allocation2 + $0xc8] sm:$0xff]
        %v496 = vld [vmem:[#allocation2 + $0xd0] sm:$0xff]
        %v497 = vld [vmem:[#allocation2 + $0xd8] sm:$0xff]
        %v498 = vld [vmem:[#allocation2 + $0xe0] sm:$0xff]
        %v499 = vld [vmem:[#allocation2 + $0xe8] sm:$0xff]
        %v500 = vld [vmem:[#allocation2 + $0xf0] sm:$0xff]
        %v501 = vld [vmem:[#allocation2 + $0xf8] sm:$0xff]
        %v502 = vld [vmem:[#allocation2 + $0x100] sm:$0xff]
        %v503 = vld [vmem:[#allocation2 + $0x108] sm:$0xff]
        %v504 = vld [vmem:[#allocation2 + $0x110] sm:$0xff]
        %v505 = vld [vmem:[#allocation2 + $0x118] sm:$0xff]
        %v506 = vld [vmem:[#allocation2 + $0x120] sm:$0xff]
        %v507 = vld [vmem:[#allocation2 + $0x128] sm:$0xff]
        %v508 = vld [vmem:[#allocation2 + $0x130] sm:$0xff]
        %v509 = vld [vmem:[#allocation2 + $0x138] sm:$0xff]
        %v510 = vld [vmem:[#allocation2 + $0x140] sm:$0xff]
        %v511 = vld [vmem:[#allocation2 + $0x148] sm:$0xff]
        %v512 = vld [vmem:[#allocation2 + $0x150] sm:$0xff]
        %v513 = vld [vmem:[#allocation2 + $0x158] sm:$0xff]
        %v514 = vld [vmem:[#allocation2 + $0x160] sm:$0xff]
        %v515 = vld [vmem:[#allocation2 + $0x168] sm:$0xff]
        %v516 = vld [vmem:[#allocation2 + $0x170] sm:$0xff]
        %v517 = vld [vmem:[#allocation2 + $0x178] sm:$0xff]
        %v518 = vld [vmem:[#allocation8] sm:$0xff]
        %v519 = vld [vmem:[#allocation8 + $0x8] sm:$0xff]
        %v521 = vsel %vm370, %v470, 0
        %v524 = vsel %vm370, %v471, 0
        %v527 = vsel %vm370, %v472, 0
        %v530 = vsel %vm370, %v473, 0
        %v533 = vsel %vm370, %v474, 0
        %v536 = vsel %vm370, %v475, 0
        %v539 = vsel %vm370, %v476, 0
        %v542 = vsel %vm370, %v477, 0
        %v545 = vsel %vm370, %v478, 0
        %v548 = vsel %vm370, %v479, 0
        %v551 = vsel %vm370, %v480, 0
        %v554 = vsel %vm370, %v481, 0
        %v557 = vsel %vm370, %v482, 0
        %v560 = vsel %vm370, %v483, 0
        %v563 = vsel %vm370, %v484, 0
        %v566 = vsel %vm370, %v485, 0
        %v569 = vsel %vm370, %v486, 0
        %v572 = vsel %vm370, %v487, 0
        %v575 = vsel %vm370, %v488, 0
        %v578 = vsel %vm370, %v489, 0
        %v581 = vsel %vm370, %v490, 0
        %v584 = vsel %vm370, %v491, 0
        %v587 = vsel %vm370, %v492, 0
        %v590 = vsel %vm370, %v493, 0
        %v593 = vsel %vm370, %v494, 0
        %v596 = vsel %vm370, %v495, 0
        %v599 = vsel %vm370, %v496, 0
        %v602 = vsel %vm370, %v497, 0
        %v605 = vsel %vm370, %v498, 0
        %v608 = vsel %vm370, %v499, 0
        %v611 = vsel %vm370, %v500, 0
        %v614 = vsel %vm370, %v501, 0
        %v617 = vsel %vm370, %v502, 0
        %v620 = vsel %vm370, %v503, 0
        %v623 = vsel %vm370, %v504, 0
        %v626 = vsel %vm370, %v505, 0
        %v629 = vsel %vm370, %v506, 0
        %v632 = vsel %vm370, %v507, 0
        %v635 = vsel %vm370, %v508, 0
        %v638 = vsel %vm370, %v509, 0
        %v641 = vsel %vm370, %v510, 0
        %v644 = vsel %vm370, %v511, 0
        %v647 = vsel %vm370, %v512, 0
        %v650 = vsel %vm370, %v513, 0
        %v653 = vsel %vm370, %v514, 0
        %v656 = vsel %vm370, %v515, 0
        %v659 = vsel %vm370, %v516, 0
        %v662 = vsel %vm370, %v517, 0
        %664 = vmatpush.msra.mxu0 0.0
        %665 = vmatpush.msra.mxu0 0.0
        %666 = vmatpush.msra.mxu0 0.0
        %667 = vmatpush.msra.mxu0 0.0
        %668 = vmatpush.msra.mxu0 0.0
        %669 = vmatpush.msra.mxu0 0.0
        %670 = vmatpush.msra.mxu0 0.0
        %671 = vmatpush.msra.mxu0 0.0
        %672 = vmatpush.msra.mxu0 0.0
        %673 = vmatpush.msra.mxu0 0.0
        %674 = vmatpush.msra.mxu0 0.0
        %675 = vmatpush.msra.mxu0 0.0
        %676 = vmatpush.msra.mxu0 0.0
        %677 = vmatpush.msra.mxu0 0.0
        %678 = vmatpush.msra.mxu0 %v519
        %679 = vmatpush.msra.mxu0 %v518
        %680 = vmatmul.f32.gmra.mxu0 %v521
        %v681 = vpop.f32.mrf.mxu0
        %v682 = vadd.f32 0.0, %v681
        %683 = vmatmul.f32.gmra.mxu0 %v524
        %v684 = vpop.f32.mrf.mxu0
        %v685 = vadd.f32 0.0, %v684
        %686 = vmatmul.f32.gmra.mxu0 %v527
        %v687 = vpop.f32.mrf.mxu0
        %v688 = vadd.f32 0.0, %v687
        %689 = vmatmul.f32.gmra.mxu0 %v530
        %v690 = vpop.f32.mrf.mxu0
        %v691 = vadd.f32 0.0, %v690
        %692 = vmatmul.f32.gmra.mxu0 %v533
        %v693 = vpop.f32.mrf.mxu0
        %v694 = vadd.f32 0.0, %v693
        %695 = vmatmul.f32.gmra.mxu0 %v536
        %v696 = vpop.f32.mrf.mxu0
        %v697 = vadd.f32 0.0, %v696
        %698 = vmatmul.f32.gmra.mxu0 %v539
        %v699 = vpop.f32.mrf.mxu0
        %v700 = vadd.f32 0.0, %v699
        %701 = vmatmul.f32.gmra.mxu0 %v542
        %v702 = vpop.f32.mrf.mxu0
        %v703 = vadd.f32 0.0, %v702
        %704 = vmatmul.f32.gmra.mxu0 %v545
        %v705 = vpop.f32.mrf.mxu0
        %v706 = vadd.f32 0.0, %v705
        %707 = vmatmul.f32.gmra.mxu0 %v548
        %v708 = vpop.f32.mrf.mxu0
        %v709 = vadd.f32 0.0, %v708
        %710 = vmatmul.f32.gmra.mxu0 %v551
        %v711 = vpop.f32.mrf.mxu0
        %v712 = vadd.f32 0.0, %v711
        %713 = vmatmul.f32.gmra.mxu0 %v554
        %v714 = vpop.f32.mrf.mxu0
        %v715 = vadd.f32 0.0, %v714
        %716 = vmatmul.f32.gmra.mxu0 %v557
        %v717 = vpop.f32.mrf.mxu0
        %v718 = vadd.f32 0.0, %v717
        %719 = vmatmul.f32.gmra.mxu0 %v560
        %v720 = vpop.f32.mrf.mxu0
        %v721 = vadd.f32 0.0, %v720
        %722 = vmatmul.f32.gmra.mxu0 %v563
        %v723 = vpop.f32.mrf.mxu0
        %v724 = vadd.f32 0.0, %v723
        %725 = vmatmul.f32.gmra.mxu0 %v566
        %v726 = vpop.f32.mrf.mxu0
        %v727 = vadd.f32 0.0, %v726
        %728 = vmatmul.f32.gmra.mxu0 %v569
        %v729 = vpop.f32.mrf.mxu0
        %v730 = vadd.f32 0.0, %v729
        %731 = vmatmul.f32.gmra.mxu0 %v572
        %v732 = vpop.f32.mrf.mxu0
        %v733 = vadd.f32 0.0, %v732
        %734 = vmatmul.f32.gmra.mxu0 %v575
        %v735 = vpop.f32.mrf.mxu0
        %v736 = vadd.f32 0.0, %v735
        %737 = vmatmul.f32.gmra.mxu0 %v578
        %v738 = vpop.f32.mrf.mxu0
        %v739 = vadd.f32 0.0, %v738
        %740 = vmatmul.f32.gmra.mxu0 %v581
        %v741 = vpop.f32.mrf.mxu0
        %v742 = vadd.f32 0.0, %v741
        %743 = vmatmul.f32.gmra.mxu0 %v584
        %v744 = vpop.f32.mrf.mxu0
        %v745 = vadd.f32 0.0, %v744
        %746 = vmatmul.f32.gmra.mxu0 %v587
        %v747 = vpop.f32.mrf.mxu0
        %v748 = vadd.f32 0.0, %v747
        %749 = vmatmul.f32.gmra.mxu0 %v590
        %v750 = vpop.f32.mrf.mxu0
        %v751 = vadd.f32 0.0, %v750
        %752 = vmatmul.f32.gmra.mxu0 %v593
        %v753 = vpop.f32.mrf.mxu0
        %v754 = vadd.f32 0.0, %v753
        %755 = vmatmul.f32.gmra.mxu0 %v596
        %v756 = vpop.f32.mrf.mxu0
        %v757 = vadd.f32 0.0, %v756
        %758 = vmatmul.f32.gmra.mxu0 %v599
        %v759 = vpop.f32.mrf.mxu0
        %v760 = vadd.f32 0.0, %v759
        %761 = vmatmul.f32.gmra.mxu0 %v602
        %v762 = vpop.f32.mrf.mxu0
        %v763 = vadd.f32 0.0, %v762
        %764 = vmatmul.f32.gmra.mxu0 %v605
        %v765 = vpop.f32.mrf.mxu0
        %v766 = vadd.f32 0.0, %v765
        %767 = vmatmul.f32.gmra.mxu0 %v608
        %v768 = vpop.f32.mrf.mxu0
        %v769 = vadd.f32 0.0, %v768
        %770 = vmatmul.f32.gmra.mxu0 %v611
        %v771 = vpop.f32.mrf.mxu0
        %v772 = vadd.f32 0.0, %v771
        %773 = vmatmul.f32.gmra.mxu0 %v614
        %v774 = vpop.f32.mrf.mxu0
        %v775 = vadd.f32 0.0, %v774
        %776 = vmatmul.f32.gmra.mxu0 %v617
        %v777 = vpop.f32.mrf.mxu0
        %v778 = vadd.f32 0.0, %v777
        %779 = vmatmul.f32.gmra.mxu0 %v620
        %v780 = vpop.f32.mrf.mxu0
        %v781 = vadd.f32 0.0, %v780
        %782 = vmatmul.f32.gmra.mxu0 %v623
        %v783 = vpop.f32.mrf.mxu0
        %v784 = vadd.f32 0.0, %v783
        %785 = vmatmul.f32.gmra.mxu0 %v626
        %v786 = vpop.f32.mrf.mxu0
        %v787 = vadd.f32 0.0, %v786
        %788 = vmatmul.f32.gmra.mxu0 %v629
        %v789 = vpop.f32.mrf.mxu0
        %v790 = vadd.f32 0.0, %v789
        %791 = vmatmul.f32.gmra.mxu0 %v632
        %v792 = vpop.f32.mrf.mxu0
        %v793 = vadd.f32 0.0, %v792
        %794 = vmatmul.f32.gmra.mxu0 %v635
        %v795 = vpop.f32.mrf.mxu0
        %v796 = vadd.f32 0.0, %v795
        %797 = vmatmul.f32.gmra.mxu0 %v638
        %v798 = vpop.f32.mrf.mxu0
        %v799 = vadd.f32 0.0, %v798
        %800 = vmatmul.f32.gmra.mxu0 %v641
        %v801 = vpop.f32.mrf.mxu0
        %v802 = vadd.f32 0.0, %v801
        %803 = vmatmul.f32.gmra.mxu0 %v644
        %v804 = vpop.f32.mrf.mxu0
        %v805 = vadd.f32 0.0, %v804
        %806 = vmatmul.f32.gmra.mxu0 %v647
        %v807 = vpop.f32.mrf.mxu0
        %v808 = vadd.f32 0.0, %v807
        %809 = vmatmul.f32.gmra.mxu0 %v650
        %v810 = vpop.f32.mrf.mxu0
        %v811 = vadd.f32 0.0, %v810
        %812 = vmatmul.f32.gmra.mxu0 %v653
        %v813 = vpop.f32.mrf.mxu0
        %v814 = vadd.f32 0.0, %v813
        %815 = vmatmul.f32.gmra.mxu0 %v656
        %v816 = vpop.f32.mrf.mxu0
        %v817 = vadd.f32 0.0, %v816
        %818 = vmatmul.f32.gmra.mxu0 %v659
        %v819 = vpop.f32.mrf.mxu0
        %v820 = vadd.f32 0.0, %v819
        %821 = vmatmul.f32.gmra.mxu0 %v662
        %v822 = vpop.f32.mrf.mxu0
        %v823 = vadd.f32 0.0, %v822
        %824 = vdwg.mxu0
        %825 = vxpose.xlu0.b32.start [1/16] %v682, 128
        %826 = vxpose.xlu0.b32.cont [2/16] %v685, 128
        %827 = vxpose.xlu0.b32.cont [3/16] 0.0, 128
        %828 = vxpose.xlu0.b32.cont [4/16] 0.0, 128
        %829 = vxpose.xlu0.b32.cont [5/16] 0.0, 128
        %830 = vxpose.xlu0.b32.cont [6/16] 0.0, 128
        %831 = vxpose.xlu0.b32.cont [7/16] 0.0, 128
        %832 = vxpose.xlu0.b32.cont [8/16] 0.0, 128
        %833 = vxpose.xlu0.b32.cont [9/16] 0.0, 128
        %834 = vxpose.xlu0.b32.cont [10/16] 0.0, 128
        %835 = vxpose.xlu0.b32.cont [11/16] 0.0, 128
        %836 = vxpose.xlu0.b32.cont [12/16] 0.0, 128
        %837 = vxpose.xlu0.b32.cont [13/16] 0.0, 128
        %838 = vxpose.xlu0.b32.cont [14/16] 0.0, 128
        %839 = vxpose.xlu0.b32.cont [15/16] 0.0, 128
        %840 = vxpose.xlu0.b32.end [16/16] 0.0, 128
        %v841 = vpop.trf.xlu0
        %v842 = vpop.trf.xlu0
        %v843 = vpop.trf.xlu0
        %v844 = vpop.trf.xlu0
        %v845 = vpop.trf.xlu0
        %v846 = vpop.trf.xlu0
        %v847 = vpop.trf.xlu0
        %v848 = vpop.trf.xlu0
        %v849 = vpop.trf.xlu0
        %v850 = vpop.trf.xlu0
        %v851 = vpop.trf.xlu0
        %v852 = vpop.trf.xlu0
        %v853 = vpop.trf.xlu0
        %v854 = vpop.trf.xlu0
        %v855 = vpop.trf.xlu0
        %v856 = vpop.trf.xlu0
        %857 = vxpose.xlu0.b32.start [1/16] %v688, 128
        %858 = vxpose.xlu0.b32.cont [2/16] %v691, 128
        %859 = vxpose.xlu0.b32.cont [3/16] 0.0, 128
        %860 = vxpose.xlu0.b32.cont [4/16] 0.0, 128
        %861 = vxpose.xlu0.b32.cont [5/16] 0.0, 128
        %862 = vxpose.xlu0.b32.cont [6/16] 0.0, 128
        %863 = vxpose.xlu0.b32.cont [7/16] 0.0, 128
        %864 = vxpose.xlu0.b32.cont [8/16] 0.0, 128
        %865 = vxpose.xlu0.b32.cont [9/16] 0.0, 128
        %866 = vxpose.xlu0.b32.cont [10/16] 0.0, 128
        %867 = vxpose.xlu0.b32.cont [11/16] 0.0, 128
        %868 = vxpose.xlu0.b32.cont [12/16] 0.0, 128
        %869 = vxpose.xlu0.b32.cont [13/16] 0.0, 128
        %870 = vxpose.xlu0.b32.cont [14/16] 0.0, 128
        %871 = vxpose.xlu0.b32.cont [15/16] 0.0, 128
        %872 = vxpose.xlu0.b32.end [16/16] 0.0, 128
        %v873 = vpop.trf.xlu0
        %v874 = vpop.trf.xlu0
        %v875 = vpop.trf.xlu0
        %v876 = vpop.trf.xlu0
        %v877 = vpop.trf.xlu0
        %v878 = vpop.trf.xlu0
        %v879 = vpop.trf.xlu0
        %v880 = vpop.trf.xlu0
        %v881 = vpop.trf.xlu0
        %v882 = vpop.trf.xlu0
        %v883 = vpop.trf.xlu0
        %v884 = vpop.trf.xlu0
        %v885 = vpop.trf.xlu0
        %v886 = vpop.trf.xlu0
        %v887 = vpop.trf.xlu0
        %v888 = vpop.trf.xlu0
        %889 = vxpose.xlu0.b32.start [1/16] %v694, 128
        %890 = vxpose.xlu0.b32.cont [2/16] %v697, 128
        %891 = vxpose.xlu0.b32.cont [3/16] 0.0, 128
        %892 = vxpose.xlu0.b32.cont [4/16] 0.0, 128
        %893 = vxpose.xlu0.b32.cont [5/16] 0.0, 128
        %894 = vxpose.xlu0.b32.cont [6/16] 0.0, 128
        %895 = vxpose.xlu0.b32.cont [7/16] 0.0, 128
        %896 = vxpose.xlu0.b32.cont [8/16] 0.0, 128
        %897 = vxpose.xlu0.b32.cont [9/16] 0.0, 128
        %898 = vxpose.xlu0.b32.cont [10/16] 0.0, 128
        %899 = vxpose.xlu0.b32.cont [11/16] 0.0, 128
        %900 = vxpose.xlu0.b32.cont [12/16] 0.0, 128
        %901 = vxpose.xlu0.b32.cont [13/16] 0.0, 128
        %902 = vxpose.xlu0.b32.cont [14/16] 0.0, 128
        %903 = vxpose.xlu0.b32.cont [15/16] 0.0, 128
        %904 = vxpose.xlu0.b32.end [16/16] 0.0, 128
        %v905 = vpop.trf.xlu0
        %v906 = vpop.trf.xlu0
        %v907 = vpop.trf.xlu0
        %v908 = vpop.trf.xlu0
        %v909 = vpop.trf.xlu0
        %v910 = vpop.trf.xlu0
        %v911 = vpop.trf.xlu0
        %v912 = vpop.trf.xlu0
        %v913 = vpop.trf.xlu0
        %v914 = vpop.trf.xlu0
        %v915 = vpop.trf.xlu0
        %v916 = vpop.trf.xlu0
        %v917 = vpop.trf.xlu0
        %v918 = vpop.trf.xlu0
        %v919 = vpop.trf.xlu0
        %v920 = vpop.trf.xlu0
        %921 = vxpose.xlu0.b32.start [1/16] %v700, 128
        %922 = vxpose.xlu0.b32.cont [2/16] %v703, 128
        %923 = vxpose.xlu0.b32.cont [3/16] 0.0, 128
        %924 = vxpose.xlu0.b32.cont [4/16] 0.0, 128
        %925 = vxpose.xlu0.b32.cont [5/16] 0.0, 128
        %926 = vxpose.xlu0.b32.cont [6/16] 0.0, 128
        %927 = vxpose.xlu0.b32.cont [7/16] 0.0, 128
        %928 = vxpose.xlu0.b32.cont [8/16] 0.0, 128
        %929 = vxpose.xlu0.b32.cont [9/16] 0.0, 128
        %930 = vxpose.xlu0.b32.cont [10/16] 0.0, 128
        %931 = vxpose.xlu0.b32.cont [11/16] 0.0, 128
        %932 = vxpose.xlu0.b32.cont [12/16] 0.0, 128
        %933 = vxpose.xlu0.b32.cont [13/16] 0.0, 128
        %934 = vxpose.xlu0.b32.cont [14/16] 0.0, 128
        %935 = vxpose.xlu0.b32.cont [15/16] 0.0, 128
        %936 = vxpose.xlu0.b32.end [16/16] 0.0, 128
        %v937 = vpop.trf.xlu0
        %v938 = vpop.trf.xlu0
        %v939 = vpop.trf.xlu0
        %v940 = vpop.trf.xlu0
        %v941 = vpop.trf.xlu0
        %v942 = vpop.trf.xlu0
        %v943 = vpop.trf.xlu0
        %v944 = vpop.trf.xlu0
        %v945 = vpop.trf.xlu0
        %v946 = vpop.trf.xlu0
        %v947 = vpop.trf.xlu0
        %v948 = vpop.trf.xlu0
        %v949 = vpop.trf.xlu0
        %v950 = vpop.trf.xlu0
        %v951 = vpop.trf.xlu0
        %v952 = vpop.trf.xlu0
        %953 = vxpose.xlu0.b32.start [1/16] %v706, 128
        %954 = vxpose.xlu0.b32.cont [2/16] %v709, 128
        %955 = vxpose.xlu0.b32.cont [3/16] 0.0, 128
        %956 = vxpose.xlu0.b32.cont [4/16] 0.0, 128
        %957 = vxpose.xlu0.b32.cont [5/16] 0.0, 128
        %958 = vxpose.xlu0.b32.cont [6/16] 0.0, 128
        %959 = vxpose.xlu0.b32.cont [7/16] 0.0, 128
        %960 = vxpose.xlu0.b32.cont [8/16] 0.0, 128
        %961 = vxpose.xlu0.b32.cont [9/16] 0.0, 128
        %962 = vxpose.xlu0.b32.cont [10/16] 0.0, 128
        %963 = vxpose.xlu0.b32.cont [11/16] 0.0, 128
        %964 = vxpose.xlu0.b32.cont [12/16] 0.0, 128
        %965 = vxpose.xlu0.b32.cont [13/16] 0.0, 128
        %966 = vxpose.xlu0.b32.cont [14/16] 0.0, 128
        %967 = vxpose.xlu0.b32.cont [15/16] 0.0, 128
        %968 = vxpose.xlu0.b32.end [16/16] 0.0, 128
        %v969 = vpop.trf.xlu0
        %v970 = vpop.trf.xlu0
        %v971 = vpop.trf.xlu0
        %v972 = vpop.trf.xlu0
        %v973 = vpop.trf.xlu0
        %v974 = vpop.trf.xlu0
        %v975 = vpop.trf.xlu0
        %v976 = vpop.trf.xlu0
        %v977 = vpop.trf.xlu0
        %v978 = vpop.trf.xlu0
        %v979 = vpop.trf.xlu0
        %v980 = vpop.trf.xlu0
        %v981 = vpop.trf.xlu0
        %v982 = vpop.trf.xlu0
        %v983 = vpop.trf.xlu0
        %v984 = vpop.trf.xlu0
        %985 = vxpose.xlu0.b32.start [1/16] %v712, 128
        %986 = vxpose.xlu0.b32.cont [2/16] %v715, 128
        %987 = vxpose.xlu0.b32.cont [3/16] 0.0, 128
        %988 = vxpose.xlu0.b32.cont [4/16] 0.0, 128
        %989 = vxpose.xlu0.b32.cont [5/16] 0.0, 128
        %990 = vxpose.xlu0.b32.cont [6/16] 0.0, 128
        %991 = vxpose.xlu0.b32.cont [7/16] 0.0, 128
        %992 = vxpose.xlu0.b32.cont [8/16] 0.0, 128
        %993 = vxpose.xlu0.b32.cont [9/16] 0.0, 128
        %994 = vxpose.xlu0.b32.cont [10/16] 0.0, 128
        %995 = vxpose.xlu0.b32.cont [11/16] 0.0, 128
        %996 = vxpose.xlu0.b32.cont [12/16] 0.0, 128
        %997 = vxpose.xlu0.b32.cont [13/16] 0.0, 128
        %998 = vxpose.xlu0.b32.cont [14/16] 0.0, 128
        %999 = vxpose.xlu0.b32.cont [15/16] 0.0, 128
        %1000 = vxpose.xlu0.b32.end [16/16] 0.0, 128
        %v1001 = vpop.trf.xlu0
        %v1002 = vpop.trf.xlu0
        %v1003 = vpop.trf.xlu0
        %v1004 = vpop.trf.xlu0
        %v1005 = vpop.trf.xlu0
        %v1006 = vpop.trf.xlu0
        %v1007 = vpop.trf.xlu0
        %v1008 = vpop.trf.xlu0
        %v1009 = vpop.trf.xlu0
        %v1010 = vpop.trf.xlu0
        %v1011 = vpop.trf.xlu0
        %v1012 = vpop.trf.xlu0
        %v1013 = vpop.trf.xlu0
        %v1014 = vpop.trf.xlu0
        %v1015 = vpop.trf.xlu0
        %v1016 = vpop.trf.xlu0
        %1017 = vxpose.xlu0.b32.start [1/16] %v718, 128
        %1018 = vxpose.xlu0.b32.cont [2/16] %v721, 128
        %1019 = vxpose.xlu0.b32.cont [3/16] 0.0, 128
        %1020 = vxpose.xlu0.b32.cont [4/16] 0.0, 128
        %1021 = vxpose.xlu0.b32.cont [5/16] 0.0, 128
        %1022 = vxpose.xlu0.b32.cont [6/16] 0.0, 128
        %1023 = vxpose.xlu0.b32.cont [7/16] 0.0, 128
        %1024 = vxpose.xlu0.b32.cont [8/16] 0.0, 128
        %1025 = vxpose.xlu0.b32.cont [9/16] 0.0, 128
        %1026 = vxpose.xlu0.b32.cont [10/16] 0.0, 128
        %1027 = vxpose.xlu0.b32.cont [11/16] 0.0, 128
        %1028 = vxpose.xlu0.b32.cont [12/16] 0.0, 128
        %1029 = vxpose.xlu0.b32.cont [13/16] 0.0, 128
        %1030 = vxpose.xlu0.b32.cont [14/16] 0.0, 128
        %1031 = vxpose.xlu0.b32.cont [15/16] 0.0, 128
        %1032 = vxpose.xlu0.b32.end [16/16] 0.0, 128
        %v1033 = vpop.trf.xlu0
        %v1034 = vpop.trf.xlu0
        %v1035 = vpop.trf.xlu0
        %v1036 = vpop.trf.xlu0
        %v1037 = vpop.trf.xlu0
        %v1038 = vpop.trf.xlu0
        %v1039 = vpop.trf.xlu0
        %v1040 = vpop.trf.xlu0
        %v1041 = vpop.trf.xlu0
        %v1042 = vpop.trf.xlu0
        %v1043 = vpop.trf.xlu0
        %v1044 = vpop.trf.xlu0
        %v1045 = vpop.trf.xlu0
        %v1046 = vpop.trf.xlu0
        %v1047 = vpop.trf.xlu0
        %v1048 = vpop.trf.xlu0
        %1049 = vxpose.xlu0.b32.start [1/16] %v724, 128
        %1050 = vxpose.xlu0.b32.cont [2/16] %v727, 128
        %1051 = vxpose.xlu0.b32.cont [3/16] 0.0, 128
        %1052 = vxpose.xlu0.b32.cont [4/16] 0.0, 128
        %1053 = vxpose.xlu0.b32.cont [5/16] 0.0, 128
        %1054 = vxpose.xlu0.b32.cont [6/16] 0.0, 128
        %1055 = vxpose.xlu0.b32.cont [7/16] 0.0, 128
        %1056 = vxpose.xlu0.b32.cont [8/16] 0.0, 128
        %1057 = vxpose.xlu0.b32.cont [9/16] 0.0, 128
        %1058 = vxpose.xlu0.b32.cont [10/16] 0.0, 128
        %1059 = vxpose.xlu0.b32.cont [11/16] 0.0, 128
        %1060 = vxpose.xlu0.b32.cont [12/16] 0.0, 128
        %1061 = vxpose.xlu0.b32.cont [13/16] 0.0, 128
        %1062 = vxpose.xlu0.b32.cont [14/16] 0.0, 128
        %1063 = vxpose.xlu0.b32.cont [15/16] 0.0, 128
        %1064 = vxpose.xlu0.b32.end [16/16] 0.0, 128
        %v1065 = vpop.trf.xlu0
        %v1066 = vpop.trf.xlu0
        %v1067 = vpop.trf.xlu0
        %v1068 = vpop.trf.xlu0
        %v1069 = vpop.trf.xlu0
        %v1070 = vpop.trf.xlu0
        %v1071 = vpop.trf.xlu0
        %v1072 = vpop.trf.xlu0
        %v1073 = vpop.trf.xlu0
        %v1074 = vpop.trf.xlu0
        %v1075 = vpop.trf.xlu0
        %v1076 = vpop.trf.xlu0
        %v1077 = vpop.trf.xlu0
        %v1078 = vpop.trf.xlu0
        %v1079 = vpop.trf.xlu0
        %v1080 = vpop.trf.xlu0
        %1081 = vxpose.xlu0.b32.start [1/16] %v730, 128
        %1082 = vxpose.xlu0.b32.cont [2/16] %v733, 128
        %1083 = vxpose.xlu0.b32.cont [3/16] 0.0, 128
        %1084 = vxpose.xlu0.b32.cont [4/16] 0.0, 128
        %1085 = vxpose.xlu0.b32.cont [5/16] 0.0, 128
        %1086 = vxpose.xlu0.b32.cont [6/16] 0.0, 128
        %1087 = vxpose.xlu0.b32.cont [7/16] 0.0, 128
        %1088 = vxpose.xlu0.b32.cont [8/16] 0.0, 128
        %1089 = vxpose.xlu0.b32.cont [9/16] 0.0, 128
        %1090 = vxpose.xlu0.b32.cont [10/16] 0.0, 128
        %1091 = vxpose.xlu0.b32.cont [11/16] 0.0, 128
        %1092 = vxpose.xlu0.b32.cont [12/16] 0.0, 128
        %1093 = vxpose.xlu0.b32.cont [13/16] 0.0, 128
        %1094 = vxpose.xlu0.b32.cont [14/16] 0.0, 128
        %1095 = vxpose.xlu0.b32.cont [15/16] 0.0, 128
        %1096 = vxpose.xlu0.b32.end [16/16] 0.0, 128
        %v1097 = vpop.trf.xlu0
        %v1098 = vpop.trf.xlu0
        %v1099 = vpop.trf.xlu0
        %v1100 = vpop.trf.xlu0
        %v1101 = vpop.trf.xlu0
        %v1102 = vpop.trf.xlu0
        %v1103 = vpop.trf.xlu0
        %v1104 = vpop.trf.xlu0
        %v1105 = vpop.trf.xlu0
        %v1106 = vpop.trf.xlu0
        %v1107 = vpop.trf.xlu0
        %v1108 = vpop.trf.xlu0
        %v1109 = vpop.trf.xlu0
        %v1110 = vpop.trf.xlu0
        %v1111 = vpop.trf.xlu0
        %v1112 = vpop.trf.xlu0
        %1113 = vxpose.xlu0.b32.start [1/16] %v736, 128
        %1114 = vxpose.xlu0.b32.cont [2/16] %v739, 128
        %1115 = vxpose.xlu0.b32.cont [3/16] 0.0, 128
        %1116 = vxpose.xlu0.b32.cont [4/16] 0.0, 128
        %1117 = vxpose.xlu0.b32.cont [5/16] 0.0, 128
        %1118 = vxpose.xlu0.b32.cont [6/16] 0.0, 128
        %1119 = vxpose.xlu0.b32.cont [7/16] 0.0, 128
        %1120 = vxpose.xlu0.b32.cont [8/16] 0.0, 128
        %1121 = vxpose.xlu0.b32.cont [9/16] 0.0, 128
        %1122 = vxpose.xlu0.b32.cont [10/16] 0.0, 128
        %1123 = vxpose.xlu0.b32.cont [11/16] 0.0, 128
        %1124 = vxpose.xlu0.b32.cont [12/16] 0.0, 128
        %1125 = vxpose.xlu0.b32.cont [13/16] 0.0, 128
        %1126 = vxpose.xlu0.b32.cont [14/16] 0.0, 128
        %1127 = vxpose.xlu0.b32.cont [15/16] 0.0, 128
        %1128 = vxpose.xlu0.b32.end [16/16] 0.0, 128
        %v1129 = vpop.trf.xlu0
        %v1130 = vpop.trf.xlu0
        %v1131 = vpop.trf.xlu0
        %v1132 = vpop.trf.xlu0
        %v1133 = vpop.trf.xlu0
        %v1134 = vpop.trf.xlu0
        %v1135 = vpop.trf.xlu0
        %v1136 = vpop.trf.xlu0
        %v1137 = vpop.trf.xlu0
        %v1138 = vpop.trf.xlu0
        %v1139 = vpop.trf.xlu0
        %v1140 = vpop.trf.xlu0
        %v1141 = vpop.trf.xlu0
        %v1142 = vpop.trf.xlu0
        %v1143 = vpop.trf.xlu0
        %v1144 = vpop.trf.xlu0
        %1145 = vxpose.xlu0.b32.start [1/16] %v742, 128
        %1146 = vxpose.xlu0.b32.cont [2/16] %v745, 128
        %1147 = vxpose.xlu0.b32.cont [3/16] 0.0, 128
        %1148 = vxpose.xlu0.b32.cont [4/16] 0.0, 128
        %1149 = vxpose.xlu0.b32.cont [5/16] 0.0, 128
        %1150 = vxpose.xlu0.b32.cont [6/16] 0.0, 128
        %1151 = vxpose.xlu0.b32.cont [7/16] 0.0, 128
        %1152 = vxpose.xlu0.b32.cont [8/16] 0.0, 128
        %1153 = vxpose.xlu0.b32.cont [9/16] 0.0, 128
        %1154 = vxpose.xlu0.b32.cont [10/16] 0.0, 128
        %1155 = vxpose.xlu0.b32.cont [11/16] 0.0, 128
        %1156 = vxpose.xlu0.b32.cont [12/16] 0.0, 128
        %1157 = vxpose.xlu0.b32.cont [13/16] 0.0, 128
        %1158 = vxpose.xlu0.b32.cont [14/16] 0.0, 128
        %1159 = vxpose.xlu0.b32.cont [15/16] 0.0, 128
        %1160 = vxpose.xlu0.b32.end [16/16] 0.0, 128
        %v1161 = vpop.trf.xlu0
        %v1162 = vpop.trf.xlu0
        %v1163 = vpop.trf.xlu0
        %v1164 = vpop.trf.xlu0
        %v1165 = vpop.trf.xlu0
        %v1166 = vpop.trf.xlu0
        %v1167 = vpop.trf.xlu0
        %v1168 = vpop.trf.xlu0
        %v1169 = vpop.trf.xlu0
        %v1170 = vpop.trf.xlu0
        %v1171 = vpop.trf.xlu0
        %v1172 = vpop.trf.xlu0
        %v1173 = vpop.trf.xlu0
        %v1174 = vpop.trf.xlu0
        %v1175 = vpop.trf.xlu0
        %v1176 = vpop.trf.xlu0
        %1177 = vxpose.xlu0.b32.start [1/16] %v748, 128
        %1178 = vxpose.xlu0.b32.cont [2/16] %v751, 128
        %1179 = vxpose.xlu0.b32.cont [3/16] 0.0, 128
        %1180 = vxpose.xlu0.b32.cont [4/16] 0.0, 128
        %1181 = vxpose.xlu0.b32.cont [5/16] 0.0, 128
        %1182 = vxpose.xlu0.b32.cont [6/16] 0.0, 128
        %1183 = vxpose.xlu0.b32.cont [7/16] 0.0, 128
        %1184 = vxpose.xlu0.b32.cont [8/16] 0.0, 128
        %1185 = vxpose.xlu0.b32.cont [9/16] 0.0, 128
        %1186 = vxpose.xlu0.b32.cont [10/16] 0.0, 128
        %1187 = vxpose.xlu0.b32.cont [11/16] 0.0, 128
        %1188 = vxpose.xlu0.b32.cont [12/16] 0.0, 128
        %1189 = vxpose.xlu0.b32.cont [13/16] 0.0, 128
        %1190 = vxpose.xlu0.b32.cont [14/16] 0.0, 128
        %1191 = vxpose.xlu0.b32.cont [15/16] 0.0, 128
        %1192 = vxpose.xlu0.b32.end [16/16] 0.0, 128
        %v1193 = vpop.trf.xlu0
        %v1194 = vpop.trf.xlu0
        %v1195 = vpop.trf.xlu0
        %v1196 = vpop.trf.xlu0
        %v1197 = vpop.trf.xlu0
        %v1198 = vpop.trf.xlu0
        %v1199 = vpop.trf.xlu0
        %v1200 = vpop.trf.xlu0
        %v1201 = vpop.trf.xlu0
        %v1202 = vpop.trf.xlu0
        %v1203 = vpop.trf.xlu0
        %v1204 = vpop.trf.xlu0
        %v1205 = vpop.trf.xlu0
        %v1206 = vpop.trf.xlu0
        %v1207 = vpop.trf.xlu0
        %v1208 = vpop.trf.xlu0
        %1209 = vxpose.xlu0.b32.start [1/16] %v754, 128
        %1210 = vxpose.xlu0.b32.cont [2/16] %v757, 128
        %1211 = vxpose.xlu0.b32.cont [3/16] 0.0, 128
        %1212 = vxpose.xlu0.b32.cont [4/16] 0.0, 128
        %1213 = vxpose.xlu0.b32.cont [5/16] 0.0, 128
        %1214 = vxpose.xlu0.b32.cont [6/16] 0.0, 128
        %1215 = vxpose.xlu0.b32.cont [7/16] 0.0, 128
        %1216 = vxpose.xlu0.b32.cont [8/16] 0.0, 128
        %1217 = vxpose.xlu0.b32.cont [9/16] 0.0, 128
        %1218 = vxpose.xlu0.b32.cont [10/16] 0.0, 128
        %1219 = vxpose.xlu0.b32.cont [11/16] 0.0, 128
        %1220 = vxpose.xlu0.b32.cont [12/16] 0.0, 128
        %1221 = vxpose.xlu0.b32.cont [13/16] 0.0, 128
        %1222 = vxpose.xlu0.b32.cont [14/16] 0.0, 128
        %1223 = vxpose.xlu0.b32.cont [15/16] 0.0, 128
        %1224 = vxpose.xlu0.b32.end [16/16] 0.0, 128
        %v1225 = vpop.trf.xlu0
        %v1226 = vpop.trf.xlu0
        %v1227 = vpop.trf.xlu0
        %v1228 = vpop.trf.xlu0
        %v1229 = vpop.trf.xlu0
        %v1230 = vpop.trf.xlu0
        %v1231 = vpop.trf.xlu0
        %v1232 = vpop.trf.xlu0
        %v1233 = vpop.trf.xlu0
        %v1234 = vpop.trf.xlu0
        %v1235 = vpop.trf.xlu0
        %v1236 = vpop.trf.xlu0
        %v1237 = vpop.trf.xlu0
        %v1238 = vpop.trf.xlu0
        %v1239 = vpop.trf.xlu0
        %v1240 = vpop.trf.xlu0
        %1241 = vxpose.xlu0.b32.start [1/16] %v760, 128
        %1242 = vxpose.xlu0.b32.cont [2/16] %v763, 128
        %1243 = vxpose.xlu0.b32.cont [3/16] 0.0, 128
        %1244 = vxpose.xlu0.b32.cont [4/16] 0.0, 128
        %1245 = vxpose.xlu0.b32.cont [5/16] 0.0, 128
        %1246 = vxpose.xlu0.b32.cont [6/16] 0.0, 128
        %1247 = vxpose.xlu0.b32.cont [7/16] 0.0, 128
        %1248 = vxpose.xlu0.b32.cont [8/16] 0.0, 128
        %1249 = vxpose.xlu0.b32.cont [9/16] 0.0, 128
        %1250 = vxpose.xlu0.b32.cont [10/16] 0.0, 128
        %1251 = vxpose.xlu0.b32.cont [11/16] 0.0, 128
        %1252 = vxpose.xlu0.b32.cont [12/16] 0.0, 128
        %1253 = vxpose.xlu0.b32.cont [13/16] 0.0, 128
        %1254 = vxpose.xlu0.b32.cont [14/16] 0.0, 128
        %1255 = vxpose.xlu0.b32.cont [15/16] 0.0, 128
        %1256 = vxpose.xlu0.b32.end [16/16] 0.0, 128
        %v1257 = vpop.trf.xlu0
        %v1258 = vpop.trf.xlu0
        %v1259 = vpop.trf.xlu0
        %v1260 = vpop.trf.xlu0
        %v1261 = vpop.trf.xlu0
        %v1262 = vpop.trf.xlu0
        %v1263 = vpop.trf.xlu0
        %v1264 = vpop.trf.xlu0
        %v1265 = vpop.trf.xlu0
        %v1266 = vpop.trf.xlu0
        %v1267 = vpop.trf.xlu0
        %v1268 = vpop.trf.xlu0
        %v1269 = vpop.trf.xlu0
        %v1270 = vpop.trf.xlu0
        %v1271 = vpop.trf.xlu0
        %v1272 = vpop.trf.xlu0
        %1273 = vxpose.xlu0.b32.start [1/16] %v766, 128
        %1274 = vxpose.xlu0.b32.cont [2/16] %v769, 128
        %1275 = vxpose.xlu0.b32.cont [3/16] 0.0, 128
        %1276 = vxpose.xlu0.b32.cont [4/16] 0.0, 128
        %1277 = vxpose.xlu0.b32.cont [5/16] 0.0, 128
        %1278 = vxpose.xlu0.b32.cont [6/16] 0.0, 128
        %1279 = vxpose.xlu0.b32.cont [7/16] 0.0, 128
        %1280 = vxpose.xlu0.b32.cont [8/16] 0.0, 128
        %1281 = vxpose.xlu0.b32.cont [9/16] 0.0, 128
        %1282 = vxpose.xlu0.b32.cont [10/16] 0.0, 128
        %1283 = vxpose.xlu0.b32.cont [11/16] 0.0, 128
        %1284 = vxpose.xlu0.b32.cont [12/16] 0.0, 128
        %1285 = vxpose.xlu0.b32.cont [13/16] 0.0, 128
        %1286 = vxpose.xlu0.b32.cont [14/16] 0.0, 128
        %1287 = vxpose.xlu0.b32.cont [15/16] 0.0, 128
        %1288 = vxpose.xlu0.b32.end [16/16] 0.0, 128
        %v1289 = vpop.trf.xlu0
        %v1290 = vpop.trf.xlu0
        %v1291 = vpop.trf.xlu0
        %v1292 = vpop.trf.xlu0
        %v1293 = vpop.trf.xlu0
        %v1294 = vpop.trf.xlu0
        %v1295 = vpop.trf.xlu0
        %v1296 = vpop.trf.xlu0
        %v1297 = vpop.trf.xlu0
        %v1298 = vpop.trf.xlu0
        %v1299 = vpop.trf.xlu0
        %v1300 = vpop.trf.xlu0
        %v1301 = vpop.trf.xlu0
        %v1302 = vpop.trf.xlu0
        %v1303 = vpop.trf.xlu0
        %v1304 = vpop.trf.xlu0
        %1305 = vxpose.xlu0.b32.start [1/16] %v772, 128
        %1306 = vxpose.xlu0.b32.cont [2/16] %v775, 128
        %1307 = vxpose.xlu0.b32.cont [3/16] 0.0, 128
        %1308 = vxpose.xlu0.b32.cont [4/16] 0.0, 128
        %1309 = vxpose.xlu0.b32.cont [5/16] 0.0, 128
        %1310 = vxpose.xlu0.b32.cont [6/16] 0.0, 128
        %1311 = vxpose.xlu0.b32.cont [7/16] 0.0, 128
        %1312 = vxpose.xlu0.b32.cont [8/16] 0.0, 128
        %1313 = vxpose.xlu0.b32.cont [9/16] 0.0, 128
        %1314 = vxpose.xlu0.b32.cont [10/16] 0.0, 128
        %1315 = vxpose.xlu0.b32.cont [11/16] 0.0, 128
        %1316 = vxpose.xlu0.b32.cont [12/16] 0.0, 128
        %1317 = vxpose.xlu0.b32.cont [13/16] 0.0, 128
        %1318 = vxpose.xlu0.b32.cont [14/16] 0.0, 128
        %1319 = vxpose.xlu0.b32.cont [15/16] 0.0, 128
        %1320 = vxpose.xlu0.b32.end [16/16] 0.0, 128
        %v1321 = vpop.trf.xlu0
        %v1322 = vpop.trf.xlu0
        %v1323 = vpop.trf.xlu0
        %v1324 = vpop.trf.xlu0
        %v1325 = vpop.trf.xlu0
        %v1326 = vpop.trf.xlu0
        %v1327 = vpop.trf.xlu0
        %v1328 = vpop.trf.xlu0
        %v1329 = vpop.trf.xlu0
        %v1330 = vpop.trf.xlu0
        %v1331 = vpop.trf.xlu0
        %v1332 = vpop.trf.xlu0
        %v1333 = vpop.trf.xlu0
        %v1334 = vpop.trf.xlu0
        %v1335 = vpop.trf.xlu0
        %v1336 = vpop.trf.xlu0
        %1337 = vxpose.xlu0.b32.start [1/16] %v778, 128
        %1338 = vxpose.xlu0.b32.cont [2/16] %v781, 128
        %1339 = vxpose.xlu0.b32.cont [3/16] 0.0, 128
        %1340 = vxpose.xlu0.b32.cont [4/16] 0.0, 128
        %1341 = vxpose.xlu0.b32.cont [5/16] 0.0, 128
        %1342 = vxpose.xlu0.b32.cont [6/16] 0.0, 128
        %1343 = vxpose.xlu0.b32.cont [7/16] 0.0, 128
        %1344 = vxpose.xlu0.b32.cont [8/16] 0.0, 128
        %1345 = vxpose.xlu0.b32.cont [9/16] 0.0, 128
        %1346 = vxpose.xlu0.b32.cont [10/16] 0.0, 128
        %1347 = vxpose.xlu0.b32.cont [11/16] 0.0, 128
        %1348 = vxpose.xlu0.b32.cont [12/16] 0.0, 128
        %1349 = vxpose.xlu0.b32.cont [13/16] 0.0, 128
        %1350 = vxpose.xlu0.b32.cont [14/16] 0.0, 128
        %1351 = vxpose.xlu0.b32.cont [15/16] 0.0, 128
        %1352 = vxpose.xlu0.b32.end [16/16] 0.0, 128
        %v1353 = vpop.trf.xlu0
        %v1354 = vpop.trf.xlu0
        %v1355 = vpop.trf.xlu0
        %v1356 = vpop.trf.xlu0
        %v1357 = vpop.trf.xlu0
        %v1358 = vpop.trf.xlu0
        %v1359 = vpop.trf.xlu0
        %v1360 = vpop.trf.xlu0
        %v1361 = vpop.trf.xlu0
        %v1362 = vpop.trf.xlu0
        %v1363 = vpop.trf.xlu0
        %v1364 = vpop.trf.xlu0
        %v1365 = vpop.trf.xlu0
        %v1366 = vpop.trf.xlu0
        %v1367 = vpop.trf.xlu0
        %v1368 = vpop.trf.xlu0
        %1369 = vxpose.xlu0.b32.start [1/16] %v784, 128
        %1370 = vxpose.xlu0.b32.cont [2/16] %v787, 128
        %1371 = vxpose.xlu0.b32.cont [3/16] 0.0, 128
        %1372 = vxpose.xlu0.b32.cont [4/16] 0.0, 128
        %1373 = vxpose.xlu0.b32.cont [5/16] 0.0, 128
        %1374 = vxpose.xlu0.b32.cont [6/16] 0.0, 128
        %1375 = vxpose.xlu0.b32.cont [7/16] 0.0, 128
        %1376 = vxpose.xlu0.b32.cont [8/16] 0.0, 128
        %1377 = vxpose.xlu0.b32.cont [9/16] 0.0, 128
        %1378 = vxpose.xlu0.b32.cont [10/16] 0.0, 128
        %1379 = vxpose.xlu0.b32.cont [11/16] 0.0, 128
        %1380 = vxpose.xlu0.b32.cont [12/16] 0.0, 128
        %1381 = vxpose.xlu0.b32.cont [13/16] 0.0, 128
        %1382 = vxpose.xlu0.b32.cont [14/16] 0.0, 128
        %1383 = vxpose.xlu0.b32.cont [15/16] 0.0, 128
        %1384 = vxpose.xlu0.b32.end [16/16] 0.0, 128
        %v1385 = vpop.trf.xlu0
        %v1386 = vpop.trf.xlu0
        %v1387 = vpop.trf.xlu0
        %v1388 = vpop.trf.xlu0
        %v1389 = vpop.trf.xlu0
        %v1390 = vpop.trf.xlu0
        %v1391 = vpop.trf.xlu0
        %v1392 = vpop.trf.xlu0
        %v1393 = vpop.trf.xlu0
        %v1394 = vpop.trf.xlu0
        %v1395 = vpop.trf.xlu0
        %v1396 = vpop.trf.xlu0
        %v1397 = vpop.trf.xlu0
        %v1398 = vpop.trf.xlu0
        %v1399 = vpop.trf.xlu0
        %v1400 = vpop.trf.xlu0
        %1401 = vxpose.xlu0.b32.start [1/16] %v790, 128
        %1402 = vxpose.xlu0.b32.cont [2/16] %v793, 128
        %1403 = vxpose.xlu0.b32.cont [3/16] 0.0, 128
        %1404 = vxpose.xlu0.b32.cont [4/16] 0.0, 128
        %1405 = vxpose.xlu0.b32.cont [5/16] 0.0, 128
        %1406 = vxpose.xlu0.b32.cont [6/16] 0.0, 128
        %1407 = vxpose.xlu0.b32.cont [7/16] 0.0, 128
        %1408 = vxpose.xlu0.b32.cont [8/16] 0.0, 128
        %1409 = vxpose.xlu0.b32.cont [9/16] 0.0, 128
        %1410 = vxpose.xlu0.b32.cont [10/16] 0.0, 128
        %1411 = vxpose.xlu0.b32.cont [11/16] 0.0, 128
        %1412 = vxpose.xlu0.b32.cont [12/16] 0.0, 128
        %1413 = vxpose.xlu0.b32.cont [13/16] 0.0, 128
        %1414 = vxpose.xlu0.b32.cont [14/16] 0.0, 128
        %1415 = vxpose.xlu0.b32.cont [15/16] 0.0, 128
        %1416 = vxpose.xlu0.b32.end [16/16] 0.0, 128
        %v1417 = vpop.trf.xlu0
        %v1418 = vpop.trf.xlu0
        %v1419 = vpop.trf.xlu0
        %v1420 = vpop.trf.xlu0
        %v1421 = vpop.trf.xlu0
        %v1422 = vpop.trf.xlu0
        %v1423 = vpop.trf.xlu0
        %v1424 = vpop.trf.xlu0
        %v1425 = vpop.trf.xlu0
        %v1426 = vpop.trf.xlu0
        %v1427 = vpop.trf.xlu0
        %v1428 = vpop.trf.xlu0
        %v1429 = vpop.trf.xlu0
        %v1430 = vpop.trf.xlu0
        %v1431 = vpop.trf.xlu0
        %v1432 = vpop.trf.xlu0
        %1433 = vxpose.xlu0.b32.start [1/16] %v796, 128
        %1434 = vxpose.xlu0.b32.cont [2/16] %v799, 128
        %1435 = vxpose.xlu0.b32.cont [3/16] 0.0, 128
        %1436 = vxpose.xlu0.b32.cont [4/16] 0.0, 128
        %1437 = vxpose.xlu0.b32.cont [5/16] 0.0, 128
        %1438 = vxpose.xlu0.b32.cont [6/16] 0.0, 128
        %1439 = vxpose.xlu0.b32.cont [7/16] 0.0, 128
        %1440 = vxpose.xlu0.b32.cont [8/16] 0.0, 128
        %1441 = vxpose.xlu0.b32.cont [9/16] 0.0, 128
        %1442 = vxpose.xlu0.b32.cont [10/16] 0.0, 128
        %1443 = vxpose.xlu0.b32.cont [11/16] 0.0, 128
        %1444 = vxpose.xlu0.b32.cont [12/16] 0.0, 128
        %1445 = vxpose.xlu0.b32.cont [13/16] 0.0, 128
        %1446 = vxpose.xlu0.b32.cont [14/16] 0.0, 128
        %1447 = vxpose.xlu0.b32.cont [15/16] 0.0, 128
        %1448 = vxpose.xlu0.b32.end [16/16] 0.0, 128
        %v1449 = vpop.trf.xlu0
        %v1450 = vpop.trf.xlu0
        %v1451 = vpop.trf.xlu0
        %v1452 = vpop.trf.xlu0
        %v1453 = vpop.trf.xlu0
        %v1454 = vpop.trf.xlu0
        %v1455 = vpop.trf.xlu0
        %v1456 = vpop.trf.xlu0
        %v1457 = vpop.trf.xlu0
        %v1458 = vpop.trf.xlu0
        %v1459 = vpop.trf.xlu0
        %v1460 = vpop.trf.xlu0
        %v1461 = vpop.trf.xlu0
        %v1462 = vpop.trf.xlu0
        %v1463 = vpop.trf.xlu0
        %v1464 = vpop.trf.xlu0
        %1465 = vxpose.xlu0.b32.start [1/16] %v802, 128
        %1466 = vxpose.xlu0.b32.cont [2/16] %v805, 128
        %1467 = vxpose.xlu0.b32.cont [3/16] 0.0, 128
        %1468 = vxpose.xlu0.b32.cont [4/16] 0.0, 128
        %1469 = vxpose.xlu0.b32.cont [5/16] 0.0, 128
        %1470 = vxpose.xlu0.b32.cont [6/16] 0.0, 128
        %1471 = vxpose.xlu0.b32.cont [7/16] 0.0, 128
        %1472 = vxpose.xlu0.b32.cont [8/16] 0.0, 128
        %1473 = vxpose.xlu0.b32.cont [9/16] 0.0, 128
        %1474 = vxpose.xlu0.b32.cont [10/16] 0.0, 128
        %1475 = vxpose.xlu0.b32.cont [11/16] 0.0, 128
        %1476 = vxpose.xlu0.b32.cont [12/16] 0.0, 128
        %1477 = vxpose.xlu0.b32.cont [13/16] 0.0, 128
        %1478 = vxpose.xlu0.b32.cont [14/16] 0.0, 128
        %1479 = vxpose.xlu0.b32.cont [15/16] 0.0, 128
        %1480 = vxpose.xlu0.b32.end [16/16] 0.0, 128
        %v1481 = vpop.trf.xlu0
        %v1482 = vpop.trf.xlu0
        %v1483 = vpop.trf.xlu0
        %v1484 = vpop.trf.xlu0
        %v1485 = vpop.trf.xlu0
        %v1486 = vpop.trf.xlu0
        %v1487 = vpop.trf.xlu0
        %v1488 = vpop.trf.xlu0
        %v1489 = vpop.trf.xlu0
        %v1490 = vpop.trf.xlu0
        %v1491 = vpop.trf.xlu0
        %v1492 = vpop.trf.xlu0
        %v1493 = vpop.trf.xlu0
        %v1494 = vpop.trf.xlu0
        %v1495 = vpop.trf.xlu0
        %v1496 = vpop.trf.xlu0
        %1497 = vxpose.xlu0.b32.start [1/16] %v808, 128
        %1498 = vxpose.xlu0.b32.cont [2/16] %v811, 128
        %1499 = vxpose.xlu0.b32.cont [3/16] 0.0, 128
        %1500 = vxpose.xlu0.b32.cont [4/16] 0.0, 128
        %1501 = vxpose.xlu0.b32.cont [5/16] 0.0, 128
        %1502 = vxpose.xlu0.b32.cont [6/16] 0.0, 128
        %1503 = vxpose.xlu0.b32.cont [7/16] 0.0, 128
        %1504 = vxpose.xlu0.b32.cont [8/16] 0.0, 128
        %1505 = vxpose.xlu0.b32.cont [9/16] 0.0, 128
        %1506 = vxpose.xlu0.b32.cont [10/16] 0.0, 128
        %1507 = vxpose.xlu0.b32.cont [11/16] 0.0, 128
        %1508 = vxpose.xlu0.b32.cont [12/16] 0.0, 128
        %1509 = vxpose.xlu0.b32.cont [13/16] 0.0, 128
        %1510 = vxpose.xlu0.b32.cont [14/16] 0.0, 128
        %1511 = vxpose.xlu0.b32.cont [15/16] 0.0, 128
        %1512 = vxpose.xlu0.b32.end [16/16] 0.0, 128
        %v1513 = vpop.trf.xlu0
        %v1514 = vpop.trf.xlu0
        %v1515 = vpop.trf.xlu0
        %v1516 = vpop.trf.xlu0
        %v1517 = vpop.trf.xlu0
        %v1518 = vpop.trf.xlu0
        %v1519 = vpop.trf.xlu0
        %v1520 = vpop.trf.xlu0
        %v1521 = vpop.trf.xlu0
        %v1522 = vpop.trf.xlu0
        %v1523 = vpop.trf.xlu0
        %v1524 = vpop.trf.xlu0
        %v1525 = vpop.trf.xlu0
        %v1526 = vpop.trf.xlu0
        %v1527 = vpop.trf.xlu0
        %v1528 = vpop.trf.xlu0
        %1529 = vxpose.xlu0.b32.start [1/16] %v814, 128
        %1530 = vxpose.xlu0.b32.cont [2/16] %v817, 128
        %1531 = vxpose.xlu0.b32.cont [3/16] 0.0, 128
        %1532 = vxpose.xlu0.b32.cont [4/16] 0.0, 128
        %1533 = vxpose.xlu0.b32.cont [5/16] 0.0, 128
        %1534 = vxpose.xlu0.b32.cont [6/16] 0.0, 128
        %1535 = vxpose.xlu0.b32.cont [7/16] 0.0, 128
        %1536 = vxpose.xlu0.b32.cont [8/16] 0.0, 128
        %1537 = vxpose.xlu0.b32.cont [9/16] 0.0, 128
        %1538 = vxpose.xlu0.b32.cont [10/16] 0.0, 128
        %1539 = vxpose.xlu0.b32.cont [11/16] 0.0, 128
        %1540 = vxpose.xlu0.b32.cont [12/16] 0.0, 128
        %1541 = vxpose.xlu0.b32.cont [13/16] 0.0, 128
        %1542 = vxpose.xlu0.b32.cont [14/16] 0.0, 128
        %1543 = vxpose.xlu0.b32.cont [15/16] 0.0, 128
        %1544 = vxpose.xlu0.b32.end [16/16] 0.0, 128
        %v1545 = vpop.trf.xlu0
        %v1546 = vpop.trf.xlu0
        %v1547 = vpop.trf.xlu0
        %v1548 = vpop.trf.xlu0
        %v1549 = vpop.trf.xlu0
        %v1550 = vpop.trf.xlu0
        %v1551 = vpop.trf.xlu0
        %v1552 = vpop.trf.xlu0
        %v1553 = vpop.trf.xlu0
        %v1554 = vpop.trf.xlu0
        %v1555 = vpop.trf.xlu0
        %v1556 = vpop.trf.xlu0
        %v1557 = vpop.trf.xlu0
        %v1558 = vpop.trf.xlu0
        %v1559 = vpop.trf.xlu0
        %v1560 = vpop.trf.xlu0
        %1561 = vxpose.xlu0.b32.start [1/16] %v820, 128
        %1562 = vxpose.xlu0.b32.cont [2/16] %v823, 128
        %1563 = vxpose.xlu0.b32.cont [3/16] 0.0, 128
        %1564 = vxpose.xlu0.b32.cont [4/16] 0.0, 128
        %1565 = vxpose.xlu0.b32.cont [5/16] 0.0, 128
        %1566 = vxpose.xlu0.b32.cont [6/16] 0.0, 128
        %1567 = vxpose.xlu0.b32.cont [7/16] 0.0, 128
        %1568 = vxpose.xlu0.b32.cont [8/16] 0.0, 128
        %1569 = vxpose.xlu0.b32.cont [9/16] 0.0, 128
        %1570 = vxpose.xlu0.b32.cont [10/16] 0.0, 128
        %1571 = vxpose.xlu0.b32.cont [11/16] 0.0, 128
        %1572 = vxpose.xlu0.b32.cont [12/16] 0.0, 128
        %1573 = vxpose.xlu0.b32.cont [13/16] 0.0, 128
        %1574 = vxpose.xlu0.b32.cont [14/16] 0.0, 128
        %1575 = vxpose.xlu0.b32.cont [15/16] 0.0, 128
        %1576 = vxpose.xlu0.b32.end [16/16] 0.0, 128
        %v1577 = vpop.trf.xlu0
        %v1578 = vpop.trf.xlu0
        %v1579 = vpop.trf.xlu0
        %v1580 = vpop.trf.xlu0
        %v1581 = vpop.trf.xlu0
        %v1582 = vpop.trf.xlu0
        %v1583 = vpop.trf.xlu0
        %v1584 = vpop.trf.xlu0
        %v1585 = vpop.trf.xlu0
        %v1586 = vpop.trf.xlu0
        %v1587 = vpop.trf.xlu0
        %v1588 = vpop.trf.xlu0
        %v1589 = vpop.trf.xlu0
        %v1590 = vpop.trf.xlu0
        %v1591 = vpop.trf.xlu0
        %v1592 = vpop.trf.xlu0
        %v1593 = vld [vmem:[#allocation7] sm:$0xff]
        %v1594 = vld [vmem:[#allocation7 + $0x8] sm:$0xff]
        %v1596 = vsel %vm370, %v841, 0
        %v1599 = vsel %vm370, %v842, 0
        %v1602 = vsel %vm370, %v873, 0
        %v1605 = vsel %vm370, %v874, 0
        %v1608 = vsel %vm370, %v905, 0
        %v1611 = vsel %vm370, %v906, 0
        %v1614 = vsel %vm370, %v937, 0
        %v1617 = vsel %vm370, %v938, 0
        %v1620 = vsel %vm370, %v969, 0
        %v1623 = vsel %vm370, %v970, 0
        %v1626 = vsel %vm370, %v1001, 0
        %v1629 = vsel %vm370, %v1002, 0
        %v1632 = vsel %vm370, %v1033, 0
        %v1635 = vsel %vm370, %v1034, 0
        %v1638 = vsel %vm370, %v1065, 0
        %v1641 = vsel %vm370, %v1066, 0
        %v1644 = vsel %vm370, %v1097, 0
        %v1647 = vsel %vm370, %v1098, 0
        %v1650 = vsel %vm370, %v1129, 0
        %v1653 = vsel %vm370, %v1130, 0
        %v1656 = vsel %vm370, %v1161, 0
        %v1659 = vsel %vm370, %v1162, 0
        %v1662 = vsel %vm370, %v1193, 0
        %v1665 = vsel %vm370, %v1194, 0
        %v1668 = vsel %vm370, %v1225, 0
        %v1671 = vsel %vm370, %v1226, 0
        %v1674 = vsel %vm370, %v1257, 0
        %v1677 = vsel %vm370, %v1258, 0
        %v1680 = vsel %vm370, %v1289, 0
        %v1683 = vsel %vm370, %v1290, 0
        %v1686 = vsel %vm370, %v1321, 0
        %v1689 = vsel %vm370, %v1322, 0
        %v1692 = vsel %vm370, %v1353, 0
        %v1695 = vsel %vm370, %v1354, 0
        %v1698 = vsel %vm370, %v1385, 0
        %v1701 = vsel %vm370, %v1386, 0
        %v1704 = vsel %vm370, %v1417, 0
        %v1707 = vsel %vm370, %v1418, 0
        %v1710 = vsel %vm370, %v1449, 0
        %v1713 = vsel %vm370, %v1450, 0
        %v1716 = vsel %vm370, %v1481, 0
        %v1719 = vsel %vm370, %v1482, 0
        %v1722 = vsel %vm370, %v1513, 0
        %v1725 = vsel %vm370, %v1514, 0
        %v1728 = vsel %vm370, %v1545, 0
        %v1731 = vsel %vm370, %v1546, 0
        %v1734 = vsel %vm370, %v1577, 0
        %v1737 = vsel %vm370, %v1578, 0
        %1739 = vmatpush.msra.mxu0 0.0
        %1740 = vmatpush.msra.mxu0 0.0
        %1741 = vmatpush.msra.mxu0 0.0
        %1742 = vmatpush.msra.mxu0 0.0
        %1743 = vmatpush.msra.mxu0 0.0
        %1744 = vmatpush.msra.mxu0 0.0
        %1745 = vmatpush.msra.mxu0 0.0
        %1746 = vmatpush.msra.mxu0 0.0
        %1747 = vmatpush.msra.mxu0 0.0
        %1748 = vmatpush.msra.mxu0 0.0
        %1749 = vmatpush.msra.mxu0 0.0
        %1750 = vmatpush.msra.mxu0 0.0
        %1751 = vmatpush.msra.mxu0 0.0
        %1752 = vmatpush.msra.mxu0 0.0
        %1753 = vmatpush.msra.mxu0 %v1594
        %1754 = vmatpush.msra.mxu0 %v1593
        %1755 = vmatmul.f32.gmra.mxu0 %v1596
        %v1756 = vpop.f32.mrf.mxu0
        %v1757 = vadd.f32 0.0, %v1756
        %1758 = vmatmul.f32.gmra.mxu0 %v1599
        %v1759 = vpop.f32.mrf.mxu0
        %v1760 = vadd.f32 0.0, %v1759
        %1761 = vmatmul.f32.gmra.mxu0 %v1602
        %v1762 = vpop.f32.mrf.mxu0
        %v1763 = vadd.f32 0.0, %v1762
        %1764 = vmatmul.f32.gmra.mxu0 %v1605
        %v1765 = vpop.f32.mrf.mxu0
        %v1766 = vadd.f32 0.0, %v1765
        %1767 = vmatmul.f32.gmra.mxu0 %v1608
        %v1768 = vpop.f32.mrf.mxu0
        %v1769 = vadd.f32 0.0, %v1768
        %1770 = vmatmul.f32.gmra.mxu0 %v1611
        %v1771 = vpop.f32.mrf.mxu0
        %v1772 = vadd.f32 0.0, %v1771
        %1773 = vmatmul.f32.gmra.mxu0 %v1614
        %v1774 = vpop.f32.mrf.mxu0
        %v1775 = vadd.f32 0.0, %v1774
        %1776 = vmatmul.f32.gmra.mxu0 %v1617
        %v1777 = vpop.f32.mrf.mxu0
        %v1778 = vadd.f32 0.0, %v1777
        %1779 = vmatmul.f32.gmra.mxu0 %v1620
        %v1780 = vpop.f32.mrf.mxu0
        %v1781 = vadd.f32 0.0, %v1780
        %1782 = vmatmul.f32.gmra.mxu0 %v1623
        %v1783 = vpop.f32.mrf.mxu0
        %v1784 = vadd.f32 0.0, %v1783
        %1785 = vmatmul.f32.gmra.mxu0 %v1626
        %v1786 = vpop.f32.mrf.mxu0
        %v1787 = vadd.f32 0.0, %v1786
        %1788 = vmatmul.f32.gmra.mxu0 %v1629
        %v1789 = vpop.f32.mrf.mxu0
        %v1790 = vadd.f32 0.0, %v1789
        %1791 = vmatmul.f32.gmra.mxu0 %v1632
        %v1792 = vpop.f32.mrf.mxu0
        %v1793 = vadd.f32 0.0, %v1792
        %1794 = vmatmul.f32.gmra.mxu0 %v1635
        %v1795 = vpop.f32.mrf.mxu0
        %v1796 = vadd.f32 0.0, %v1795
        %1797 = vmatmul.f32.gmra.mxu0 %v1638
        %v1798 = vpop.f32.mrf.mxu0
        %v1799 = vadd.f32 0.0, %v1798
        %1800 = vmatmul.f32.gmra.mxu0 %v1641
        %v1801 = vpop.f32.mrf.mxu0
        %v1802 = vadd.f32 0.0, %v1801
        %1803 = vmatmul.f32.gmra.mxu0 %v1644
        %v1804 = vpop.f32.mrf.mxu0
        %v1805 = vadd.f32 0.0, %v1804
        %1806 = vmatmul.f32.gmra.mxu0 %v1647
        %v1807 = vpop.f32.mrf.mxu0
        %v1808 = vadd.f32 0.0, %v1807
        %1809 = vmatmul.f32.gmra.mxu0 %v1650
        %v1810 = vpop.f32.mrf.mxu0
        %v1811 = vadd.f32 0.0, %v1810
        %1812 = vmatmul.f32.gmra.mxu0 %v1653
        %v1813 = vpop.f32.mrf.mxu0
        %v1814 = vadd.f32 0.0, %v1813
        %1815 = vmatmul.f32.gmra.mxu0 %v1656
        %v1816 = vpop.f32.mrf.mxu0
        %v1817 = vadd.f32 0.0, %v1816
        %1818 = vmatmul.f32.gmra.mxu0 %v1659
        %v1819 = vpop.f32.mrf.mxu0
        %v1820 = vadd.f32 0.0, %v1819
        %1821 = vmatmul.f32.gmra.mxu0 %v1662
        %v1822 = vpop.f32.mrf.mxu0
        %v1823 = vadd.f32 0.0, %v1822
        %1824 = vmatmul.f32.gmra.mxu0 %v1665
        %v1825 = vpop.f32.mrf.mxu0
        %v1826 = vadd.f32 0.0, %v1825
        %1827 = vmatmul.f32.gmra.mxu0 %v1668
        %v1828 = vpop.f32.mrf.mxu0
        %v1829 = vadd.f32 0.0, %v1828
        %1830 = vmatmul.f32.gmra.mxu0 %v1671
        %v1831 = vpop.f32.mrf.mxu0
        %v1832 = vadd.f32 0.0, %v1831
        %1833 = vmatmul.f32.gmra.mxu0 %v1674
        %v1834 = vpop.f32.mrf.mxu0
        %v1835 = vadd.f32 0.0, %v1834
        %1836 = vmatmul.f32.gmra.mxu0 %v1677
        %v1837 = vpop.f32.mrf.mxu0
        %v1838 = vadd.f32 0.0, %v1837
        %1839 = vmatmul.f32.gmra.mxu0 %v1680
        %v1840 = vpop.f32.mrf.mxu0
        %v1841 = vadd.f32 0.0, %v1840
        %1842 = vmatmul.f32.gmra.mxu0 %v1683
        %v1843 = vpop.f32.mrf.mxu0
        %v1844 = vadd.f32 0.0, %v1843
        %1845 = vmatmul.f32.gmra.mxu0 %v1686
        %v1846 = vpop.f32.mrf.mxu0
        %v1847 = vadd.f32 0.0, %v1846
        %1848 = vmatmul.f32.gmra.mxu0 %v1689
        %v1849 = vpop.f32.mrf.mxu0
        %v1850 = vadd.f32 0.0, %v1849
        %1851 = vmatmul.f32.gmra.mxu0 %v1692
        %v1852 = vpop.f32.mrf.mxu0
        %v1853 = vadd.f32 0.0, %v1852
        %1854 = vmatmul.f32.gmra.mxu0 %v1695
        %v1855 = vpop.f32.mrf.mxu0
        %v1856 = vadd.f32 0.0, %v1855
        %1857 = vmatmul.f32.gmra.mxu0 %v1698
        %v1858 = vpop.f32.mrf.mxu0
        %v1859 = vadd.f32 0.0, %v1858
        %1860 = vmatmul.f32.gmra.mxu0 %v1701
        %v1861 = vpop.f32.mrf.mxu0
        %v1862 = vadd.f32 0.0, %v1861
        %1863 = vmatmul.f32.gmra.mxu0 %v1704
        %v1864 = vpop.f32.mrf.mxu0
        %v1865 = vadd.f32 0.0, %v1864
        %1866 = vmatmul.f32.gmra.mxu0 %v1707
        %v1867 = vpop.f32.mrf.mxu0
        %v1868 = vadd.f32 0.0, %v1867
        %1869 = vmatmul.f32.gmra.mxu0 %v1710
        %v1870 = vpop.f32.mrf.mxu0
        %v1871 = vadd.f32 0.0, %v1870
        %1872 = vmatmul.f32.gmra.mxu0 %v1713
        %v1873 = vpop.f32.mrf.mxu0
        %v1874 = vadd.f32 0.0, %v1873
        %1875 = vmatmul.f32.gmra.mxu0 %v1716
        %v1876 = vpop.f32.mrf.mxu0
        %v1877 = vadd.f32 0.0, %v1876
        %1878 = vmatmul.f32.gmra.mxu0 %v1719
        %v1879 = vpop.f32.mrf.mxu0
        %v1880 = vadd.f32 0.0, %v1879
        %1881 = vmatmul.f32.gmra.mxu0 %v1722
        %v1882 = vpop.f32.mrf.mxu0
        %v1883 = vadd.f32 0.0, %v1882
        %1884 = vmatmul.f32.gmra.mxu0 %v1725
        %v1885 = vpop.f32.mrf.mxu0
        %v1886 = vadd.f32 0.0, %v1885
        %1887 = vmatmul.f32.gmra.mxu0 %v1728
        %v1888 = vpop.f32.mrf.mxu0
        %v1889 = vadd.f32 0.0, %v1888
        %1890 = vmatmul.f32.gmra.mxu0 %v1731
        %v1891 = vpop.f32.mrf.mxu0
        %v1892 = vadd.f32 0.0, %v1891
        %1893 = vmatmul.f32.gmra.mxu0 %v1734
        %v1894 = vpop.f32.mrf.mxu0
        %v1895 = vadd.f32 0.0, %v1894
        %1896 = vmatmul.f32.gmra.mxu0 %v1737
        %v1897 = vpop.f32.mrf.mxu0
        %v1898 = vadd.f32 0.0, %v1897
        %1899 = vdwg.mxu0
        %v1900 = vmul.f32 %v1757, 2.0
        %v1901 = vmul.f32 %v1760, 2.0
        %v1902 = vmul.f32 %v1763, 2.0
        %v1903 = vmul.f32 %v1766, 2.0
        %v1904 = vmul.f32 %v1769, 2.0
        %v1905 = vmul.f32 %v1772, 2.0
        %v1906 = vmul.f32 %v1775, 2.0
        %v1907 = vmul.f32 %v1778, 2.0
        %v1908 = vmul.f32 %v1781, 2.0
        %v1909 = vmul.f32 %v1784, 2.0
        %v1910 = vmul.f32 %v1787, 2.0
        %v1911 = vmul.f32 %v1790, 2.0
        %v1912 = vmul.f32 %v1900, %v1793
        %v1913 = vmul.f32 %v1901, %v1796
        %v1914 = vmul.f32 %v1902, %v1799
        %v1915 = vmul.f32 %v1903, %v1802
        %v1916 = vmul.f32 %v1904, %v1805
        %v1917 = vmul.f32 %v1905, %v1808
        %v1918 = vmul.f32 %v1906, %v1811
        %v1919 = vmul.f32 %v1907, %v1814
        %v1920 = vmul.f32 %v1908, %v1817
        %v1921 = vmul.f32 %v1909, %v1820
        %v1922 = vmul.f32 %v1910, %v1823
        %v1923 = vmul.f32 %v1911, %v1826
        %v1924 = vmul.f32 %v1757, %v1757
        %v1925 = vmul.f32 %v1760, %v1760
        %v1926 = vmul.f32 %v1763, %v1763
        %v1927 = vmul.f32 %v1766, %v1766
        %v1928 = vmul.f32 %v1769, %v1769
        %v1929 = vmul.f32 %v1772, %v1772
        %v1930 = vmul.f32 %v1775, %v1775
        %v1931 = vmul.f32 %v1778, %v1778
        %v1932 = vmul.f32 %v1781, %v1781
        %v1933 = vmul.f32 %v1784, %v1784
        %v1934 = vmul.f32 %v1787, %v1787
        %v1935 = vmul.f32 %v1790, %v1790
        %v1936 = vmul.f32 %v1793, %v1793
        %v1937 = vmul.f32 %v1796, %v1796
        %v1938 = vmul.f32 %v1799, %v1799
        %v1939 = vmul.f32 %v1802, %v1802
        %v1940 = vmul.f32 %v1805, %v1805
        %v1941 = vmul.f32 %v1808, %v1808
        %v1942 = vmul.f32 %v1811, %v1811
        %v1943 = vmul.f32 %v1814, %v1814
        %v1944 = vmul.f32 %v1817, %v1817
        %v1945 = vmul.f32 %v1820, %v1820
        %v1946 = vmul.f32 %v1823, %v1823
        %v1947 = vmul.f32 %v1826, %v1826
        %v1948 = vadd.f32 %v1924, %v1936
        %v1949 = vadd.f32 %v1925, %v1937
        %v1950 = vadd.f32 %v1926, %v1938
        %v1951 = vadd.f32 %v1927, %v1939
        %v1952 = vadd.f32 %v1928, %v1940
        %v1953 = vadd.f32 %v1929, %v1941
        %v1954 = vadd.f32 %v1930, %v1942
        %v1955 = vadd.f32 %v1931, %v1943
        %v1956 = vadd.f32 %v1932, %v1944
        %v1957 = vadd.f32 %v1933, %v1945
        %v1958 = vadd.f32 %v1934, %v1946
        %v1959 = vadd.f32 %v1935, %v1947
        %v1960 = vadd.f32 %v1912, 6.5025
        %v1961 = vadd.f32 %v1913, 6.5025
        %v1962 = vadd.f32 %v1914, 6.5025
        %v1963 = vadd.f32 %v1915, 6.5025
        %v1964 = vadd.f32 %v1916, 6.5025
        %v1965 = vadd.f32 %v1917, 6.5025
        %v1966 = vadd.f32 %v1918, 6.5025
        %v1967 = vadd.f32 %v1919, 6.5025
        %v1968 = vadd.f32 %v1920, 6.5025
        %v1969 = vadd.f32 %v1921, 6.5025
        %v1970 = vadd.f32 %v1922, 6.5025
        %v1971 = vadd.f32 %v1923, 6.5025
        %v1972 = vadd.f32 %v1948, 6.5025
        %v1973 = vadd.f32 %v1949, 6.5025
        %v1974 = vadd.f32 %v1950, 6.5025
        %v1975 = vadd.f32 %v1951, 6.5025
        %v1976 = vadd.f32 %v1952, 6.5025
        %v1977 = vadd.f32 %v1953, 6.5025
        %v1978 = vadd.f32 %v1954, 6.5025
        %v1979 = vadd.f32 %v1955, 6.5025
        %v1980 = vadd.f32 %v1956, 6.5025
        %v1981 = vadd.f32 %v1957, 6.5025
        %v1982 = vadd.f32 %v1958, 6.5025
        %v1983 = vadd.f32 %v1959, 6.5025
        %v1984 = vrcp.pop %v1972
        %v1985 = vmul.f32 %v1972, %v1984
        %v1986 = vsub.f32 1.0, %v1985
        %v1987 = vmul.f32 %v1984, %v1986
        %v1988 = vadd.f32 %v1984, %v1987
        %vm1989 = vweird.f32 %v1972
        %vm1990 = vweird.f32 %v1984
        %vm1991 = vmor %vm1989, %vm1990
        %v1992 = vsel %vm1991, %v1984, %v1988
        %v1993 = vand.u32 2147483647, %v1972
        %vm1994 = vcmp.eq.f32.partialorder %v1993, 8.507059e+37
        %v1995 = vand.u32 %v1972, 2147483648
        %v1996 = vor.u32 1.1754944e-38, %v1995
        %v1997 = vsel %vm1994, %v1996, %v1992
        %v1998 = vmul.f32 %v1960, %v1997
        %v1999 = vrcp.pop %v1973
        %v2000 = vmul.f32 %v1973, %v1999
        %v2001 = vsub.f32 1.0, %v2000
        %v2002 = vmul.f32 %v1999, %v2001
        %v2003 = vadd.f32 %v1999, %v2002
        %vm2004 = vweird.f32 %v1973
        %vm2005 = vweird.f32 %v1999
        %vm2006 = vmor %vm2004, %vm2005
        %v2007 = vsel %vm2006, %v1999, %v2003
        %v2008 = vand.u32 2147483647, %v1973
        %vm2009 = vcmp.eq.f32.partialorder %v2008, 8.507059e+37
        %v2010 = vand.u32 %v1973, 2147483648
        %v2011 = vor.u32 1.1754944e-38, %v2010
        %v2012 = vsel %vm2009, %v2011, %v2007
        %v2013 = vmul.f32 %v1961, %v2012
        %v2014 = vrcp.pop %v1974
        %v2015 = vmul.f32 %v1974, %v2014
        %v2016 = vsub.f32 1.0, %v2015
        %v2017 = vmul.f32 %v2014, %v2016
        %v2018 = vadd.f32 %v2014, %v2017
        %vm2019 = vweird.f32 %v1974
        %vm2020 = vweird.f32 %v2014
        %vm2021 = vmor %vm2019, %vm2020
        %v2022 = vsel %vm2021, %v2014, %v2018
        %v2023 = vand.u32 2147483647, %v1974
        %vm2024 = vcmp.eq.f32.partialorder %v2023, 8.507059e+37
        %v2025 = vand.u32 %v1974, 2147483648
        %v2026 = vor.u32 1.1754944e-38, %v2025
        %v2027 = vsel %vm2024, %v2026, %v2022
        %v2028 = vmul.f32 %v1962, %v2027
        %v2029 = vrcp.pop %v1975
        %v2030 = vmul.f32 %v1975, %v2029
        %v2031 = vsub.f32 1.0, %v2030
        %v2032 = vmul.f32 %v2029, %v2031
        %v2033 = vadd.f32 %v2029, %v2032
        %vm2034 = vweird.f32 %v1975
        %vm2035 = vweird.f32 %v2029
        %vm2036 = vmor %vm2034, %vm2035
        %v2037 = vsel %vm2036, %v2029, %v2033
        %v2038 = vand.u32 2147483647, %v1975
        %vm2039 = vcmp.eq.f32.partialorder %v2038, 8.507059e+37
        %v2040 = vand.u32 %v1975, 2147483648
        %v2041 = vor.u32 1.1754944e-38, %v2040
        %v2042 = vsel %vm2039, %v2041, %v2037
        %v2043 = vmul.f32 %v1963, %v2042
        %v2044 = vrcp.pop %v1976
        %v2045 = vmul.f32 %v1976, %v2044
        %v2046 = vsub.f32 1.0, %v2045
        %v2047 = vmul.f32 %v2044, %v2046
        %v2048 = vadd.f32 %v2044, %v2047
        %vm2049 = vweird.f32 %v1976
        %vm2050 = vweird.f32 %v2044
        %vm2051 = vmor %vm2049, %vm2050
        %v2052 = vsel %vm2051, %v2044, %v2048
        %v2053 = vand.u32 2147483647, %v1976
        %vm2054 = vcmp.eq.f32.partialorder %v2053, 8.507059e+37
        %v2055 = vand.u32 %v1976, 2147483648
        %v2056 = vor.u32 1.1754944e-38, %v2055
        %v2057 = vsel %vm2054, %v2056, %v2052
        %v2058 = vmul.f32 %v1964, %v2057
        %v2059 = vrcp.pop %v1977
        %v2060 = vmul.f32 %v1977, %v2059
        %v2061 = vsub.f32 1.0, %v2060
        %v2062 = vmul.f32 %v2059, %v2061
        %v2063 = vadd.f32 %v2059, %v2062
        %vm2064 = vweird.f32 %v1977
        %vm2065 = vweird.f32 %v2059
        %vm2066 = vmor %vm2064, %vm2065
        %v2067 = vsel %vm2066, %v2059, %v2063
        %v2068 = vand.u32 2147483647, %v1977
        %vm2069 = vcmp.eq.f32.partialorder %v2068, 8.507059e+37
        %v2070 = vand.u32 %v1977, 2147483648
        %v2071 = vor.u32 1.1754944e-38, %v2070
        %v2072 = vsel %vm2069, %v2071, %v2067
        %v2073 = vmul.f32 %v1965, %v2072
        %v2074 = vrcp.pop %v1978
        %v2075 = vmul.f32 %v1978, %v2074
        %v2076 = vsub.f32 1.0, %v2075
        %v2077 = vmul.f32 %v2074, %v2076
        %v2078 = vadd.f32 %v2074, %v2077
        %vm2079 = vweird.f32 %v1978
        %vm2080 = vweird.f32 %v2074
        %vm2081 = vmor %vm2079, %vm2080
        %v2082 = vsel %vm2081, %v2074, %v2078
        %v2083 = vand.u32 2147483647, %v1978
        %vm2084 = vcmp.eq.f32.partialorder %v2083, 8.507059e+37
        %v2085 = vand.u32 %v1978, 2147483648
        %v2086 = vor.u32 1.1754944e-38, %v2085
        %v2087 = vsel %vm2084, %v2086, %v2082
        %v2088 = vmul.f32 %v1966, %v2087
        %v2089 = vrcp.pop %v1979
        %v2090 = vmul.f32 %v1979, %v2089
        %v2091 = vsub.f32 1.0, %v2090
        %v2092 = vmul.f32 %v2089, %v2091
        %v2093 = vadd.f32 %v2089, %v2092
        %vm2094 = vweird.f32 %v1979
        %vm2095 = vweird.f32 %v2089
        %vm2096 = vmor %vm2094, %vm2095
        %v2097 = vsel %vm2096, %v2089, %v2093
        %v2098 = vand.u32 2147483647, %v1979
        %vm2099 = vcmp.eq.f32.partialorder %v2098, 8.507059e+37
        %v2100 = vand.u32 %v1979, 2147483648
        %v2101 = vor.u32 1.1754944e-38, %v2100
        %v2102 = vsel %vm2099, %v2101, %v2097
        %v2103 = vmul.f32 %v1967, %v2102
        %v2104 = vrcp.pop %v1980
        %v2105 = vmul.f32 %v1980, %v2104
        %v2106 = vsub.f32 1.0, %v2105
        %v2107 = vmul.f32 %v2104, %v2106
        %v2108 = vadd.f32 %v2104, %v2107
        %vm2109 = vweird.f32 %v1980
        %vm2110 = vweird.f32 %v2104
        %vm2111 = vmor %vm2109, %vm2110
        %v2112 = vsel %vm2111, %v2104, %v2108
        %v2113 = vand.u32 2147483647, %v1980
        %vm2114 = vcmp.eq.f32.partialorder %v2113, 8.507059e+37
        %v2115 = vand.u32 %v1980, 2147483648
        %v2116 = vor.u32 1.1754944e-38, %v2115
        %v2117 = vsel %vm2114, %v2116, %v2112
        %v2118 = vmul.f32 %v1968, %v2117
        %v2119 = vrcp.pop %v1981
        %v2120 = vmul.f32 %v1981, %v2119
        %v2121 = vsub.f32 1.0, %v2120
        %v2122 = vmul.f32 %v2119, %v2121
        %v2123 = vadd.f32 %v2119, %v2122
        %vm2124 = vweird.f32 %v1981
        %vm2125 = vweird.f32 %v2119
        %vm2126 = vmor %vm2124, %vm2125
        %v2127 = vsel %vm2126, %v2119, %v2123
        %v2128 = vand.u32 2147483647, %v1981
        %vm2129 = vcmp.eq.f32.partialorder %v2128, 8.507059e+37
        %v2130 = vand.u32 %v1981, 2147483648
        %v2131 = vor.u32 1.1754944e-38, %v2130
        %v2132 = vsel %vm2129, %v2131, %v2127
        %v2133 = vmul.f32 %v1969, %v2132
        %v2134 = vrcp.pop %v1982
        %v2135 = vmul.f32 %v1982, %v2134
        %v2136 = vsub.f32 1.0, %v2135
        %v2137 = vmul.f32 %v2134, %v2136
        %v2138 = vadd.f32 %v2134, %v2137
        %vm2139 = vweird.f32 %v1982
        %vm2140 = vweird.f32 %v2134
        %vm2141 = vmor %vm2139, %vm2140
        %v2142 = vsel %vm2141, %v2134, %v2138
        %v2143 = vand.u32 2147483647, %v1982
        %vm2144 = vcmp.eq.f32.partialorder %v2143, 8.507059e+37
        %v2145 = vand.u32 %v1982, 2147483648
        %v2146 = vor.u32 1.1754944e-38, %v2145
        %v2147 = vsel %vm2144, %v2146, %v2142
        %v2148 = vmul.f32 %v1970, %v2147
        %v2149 = vrcp.pop %v1983
        %v2150 = vmul.f32 %v1983, %v2149
        %v2151 = vsub.f32 1.0, %v2150
        %v2152 = vmul.f32 %v2149, %v2151
        %v2153 = vadd.f32 %v2149, %v2152
        %vm2154 = vweird.f32 %v1983
        %vm2155 = vweird.f32 %v2149
        %vm2156 = vmor %vm2154, %vm2155
        %v2157 = vsel %vm2156, %v2149, %v2153
        %v2158 = vand.u32 2147483647, %v1983
        %vm2159 = vcmp.eq.f32.partialorder %v2158, 8.507059e+37
        %v2160 = vand.u32 %v1983, 2147483648
        %v2161 = vor.u32 1.1754944e-38, %v2160
        %v2162 = vsel %vm2159, %v2161, %v2157
        %v2163 = vmul.f32 %v1971, %v2162
        %v2164 = vmul.f32 %v1829, 2.0
        %v2165 = vmul.f32 %v1832, 2.0
        %v2166 = vmul.f32 %v1835, 2.0
        %v2167 = vmul.f32 %v1838, 2.0
        %v2168 = vmul.f32 %v1841, 2.0
        %v2169 = vmul.f32 %v1844, 2.0
        %v2170 = vmul.f32 %v1847, 2.0
        %v2171 = vmul.f32 %v1850, 2.0
        %v2172 = vmul.f32 %v1853, 2.0
        %v2173 = vmul.f32 %v1856, 2.0
        %v2174 = vmul.f32 %v1859, 2.0
        %v2175 = vmul.f32 %v1862, 2.0
        %v2176 = vsub.f32 %v2164, %v1912
        %v2177 = vsub.f32 %v2165, %v1913
        %v2178 = vsub.f32 %v2166, %v1914
        %v2179 = vsub.f32 %v2167, %v1915
        %v2180 = vsub.f32 %v2168, %v1916
        %v2181 = vsub.f32 %v2169, %v1917
        %v2182 = vsub.f32 %v2170, %v1918
        %v2183 = vsub.f32 %v2171, %v1919
        %v2184 = vsub.f32 %v2172, %v1920
        %v2185 = vsub.f32 %v2173, %v1921
        %v2186 = vsub.f32 %v2174, %v1922
        %v2187 = vsub.f32 %v2175, %v1923
        %v2188 = vadd.f32 %v2176, 58.5225
        %v2189 = vadd.f32 %v2177, 58.5225
        %v2190 = vadd.f32 %v2178, 58.5225
        %v2191 = vadd.f32 %v2179, 58.5225
        %v2192 = vadd.f32 %v2180, 58.5225
        %v2193 = vadd.f32 %v2181, 58.5225
        %v2194 = vadd.f32 %v2182, 58.5225
        %v2195 = vadd.f32 %v2183, 58.5225
        %v2196 = vadd.f32 %v2184, 58.5225
        %v2197 = vadd.f32 %v2185, 58.5225
        %v2198 = vadd.f32 %v2186, 58.5225
        %v2199 = vadd.f32 %v2187, 58.5225
        %v2200 = vsub.f32 %v1865, %v1948
        %v2201 = vsub.f32 %v1868, %v1949
        %v2202 = vsub.f32 %v1871, %v1950
        %v2203 = vsub.f32 %v1874, %v1951
        %v2204 = vsub.f32 %v1877, %v1952
        %v2205 = vsub.f32 %v1880, %v1953
        %v2206 = vsub.f32 %v1883, %v1954
        %v2207 = vsub.f32 %v1886, %v1955
        %v2208 = vsub.f32 %v1889, %v1956
        %v2209 = vsub.f32 %v1892, %v1957
        %v2210 = vsub.f32 %v1895, %v1958
        %v2211 = vsub.f32 %v1898, %v1959
        %v2212 = vadd.f32 %v2200, 58.5225
        %v2213 = vadd.f32 %v2201, 58.5225
        %v2214 = vadd.f32 %v2202, 58.5225
        %v2215 = vadd.f32 %v2203, 58.5225
        %v2216 = vadd.f32 %v2204, 58.5225
        %v2217 = vadd.f32 %v2205, 58.5225
        %v2218 = vadd.f32 %v2206, 58.5225
        %v2219 = vadd.f32 %v2207, 58.5225
        %v2220 = vadd.f32 %v2208, 58.5225
        %v2221 = vadd.f32 %v2209, 58.5225
        %v2222 = vadd.f32 %v2210, 58.5225
        %v2223 = vadd.f32 %v2211, 58.5225
        %v2224 = vrcp.pop %v2212
        %v2225 = vmul.f32 %v2212, %v2224
        %v2226 = vsub.f32 1.0, %v2225
        %v2227 = vmul.f32 %v2224, %v2226
        %v2228 = vadd.f32 %v2224, %v2227
        %vm2229 = vweird.f32 %v2212
        %vm2230 = vweird.f32 %v2224
        %vm2231 = vmor %vm2229, %vm2230
        %v2232 = vsel %vm2231, %v2224, %v2228
        %v2233 = vand.u32 2147483647, %v2212
        %vm2234 = vcmp.eq.f32.partialorder %v2233, 8.507059e+37
        %v2235 = vand.u32 %v2212, 2147483648
        %v2236 = vor.u32 1.1754944e-38, %v2235
        %v2237 = vsel %vm2234, %v2236, %v2232
        %v2238 = vmul.f32 %v2188, %v2237
        %v2239 = vrcp.pop %v2213
        %v2240 = vmul.f32 %v2213, %v2239
        %v2241 = vsub.f32 1.0, %v2240
        %v2242 = vmul.f32 %v2239, %v2241
        %v2243 = vadd.f32 %v2239, %v2242
        %vm2244 = vweird.f32 %v2213
        %vm2245 = vweird.f32 %v2239
        %vm2246 = vmor %vm2244, %vm2245
        %v2247 = vsel %vm2246, %v2239, %v2243
        %v2248 = vand.u32 2147483647, %v2213
        %vm2249 = vcmp.eq.f32.partialorder %v2248, 8.507059e+37
        %v2250 = vand.u32 %v2213, 2147483648
        %v2251 = vor.u32 1.1754944e-38, %v2250
        %v2252 = vsel %vm2249, %v2251, %v2247
        %v2253 = vmul.f32 %v2189, %v2252
        %v2254 = vrcp.pop %v2214
        %v2255 = vmul.f32 %v2214, %v2254
        %v2256 = vsub.f32 1.0, %v2255
        %v2257 = vmul.f32 %v2254, %v2256
        %v2258 = vadd.f32 %v2254, %v2257
        %vm2259 = vweird.f32 %v2214
        %vm2260 = vweird.f32 %v2254
        %vm2261 = vmor %vm2259, %vm2260
        %v2262 = vsel %vm2261, %v2254, %v2258
        %v2263 = vand.u32 2147483647, %v2214
        %vm2264 = vcmp.eq.f32.partialorder %v2263, 8.507059e+37
        %v2265 = vand.u32 %v2214, 2147483648
        %v2266 = vor.u32 1.1754944e-38, %v2265
        %v2267 = vsel %vm2264, %v2266, %v2262
        %v2268 = vmul.f32 %v2190, %v2267
        %v2269 = vrcp.pop %v2215
        %v2270 = vmul.f32 %v2215, %v2269
        %v2271 = vsub.f32 1.0, %v2270
        %v2272 = vmul.f32 %v2269, %v2271
        %v2273 = vadd.f32 %v2269, %v2272
        %vm2274 = vweird.f32 %v2215
        %vm2275 = vweird.f32 %v2269
        %vm2276 = vmor %vm2274, %vm2275
        %v2277 = vsel %vm2276, %v2269, %v2273
        %v2278 = vand.u32 2147483647, %v2215
        %vm2279 = vcmp.eq.f32.partialorder %v2278, 8.507059e+37
        %v2280 = vand.u32 %v2215, 2147483648
        %v2281 = vor.u32 1.1754944e-38, %v2280
        %v2282 = vsel %vm2279, %v2281, %v2277
        %v2283 = vmul.f32 %v2191, %v2282
        %v2284 = vrcp.pop %v2216
        %v2285 = vmul.f32 %v2216, %v2284
        %v2286 = vsub.f32 1.0, %v2285
        %v2287 = vmul.f32 %v2284, %v2286
        %v2288 = vadd.f32 %v2284, %v2287
        %vm2289 = vweird.f32 %v2216
        %vm2290 = vweird.f32 %v2284
        %vm2291 = vmor %vm2289, %vm2290
        %v2292 = vsel %vm2291, %v2284, %v2288
        %v2293 = vand.u32 2147483647, %v2216
        %vm2294 = vcmp.eq.f32.partialorder %v2293, 8.507059e+37
        %v2295 = vand.u32 %v2216, 2147483648
        %v2296 = vor.u32 1.1754944e-38, %v2295
        %v2297 = vsel %vm2294, %v2296, %v2292
        %v2298 = vmul.f32 %v2192, %v2297
        %v2299 = vrcp.pop %v2217
        %v2300 = vmul.f32 %v2217, %v2299
        %v2301 = vsub.f32 1.0, %v2300
        %v2302 = vmul.f32 %v2299, %v2301
        %v2303 = vadd.f32 %v2299, %v2302
        %vm2304 = vweird.f32 %v2217
        %vm2305 = vweird.f32 %v2299
        %vm2306 = vmor %vm2304, %vm2305
        %v2307 = vsel %vm2306, %v2299, %v2303
        %v2308 = vand.u32 2147483647, %v2217
        %vm2309 = vcmp.eq.f32.partialorder %v2308, 8.507059e+37
        %v2310 = vand.u32 %v2217, 2147483648
        %v2311 = vor.u32 1.1754944e-38, %v2310
        %v2312 = vsel %vm2309, %v2311, %v2307
        %v2313 = vmul.f32 %v2193, %v2312
        %v2314 = vrcp.pop %v2218
        %v2315 = vmul.f32 %v2218, %v2314
        %v2316 = vsub.f32 1.0, %v2315
        %v2317 = vmul.f32 %v2314, %v2316
        %v2318 = vadd.f32 %v2314, %v2317
        %vm2319 = vweird.f32 %v2218
        %vm2320 = vweird.f32 %v2314
        %vm2321 = vmor %vm2319, %vm2320
        %v2322 = vsel %vm2321, %v2314, %v2318
        %v2323 = vand.u32 2147483647, %v2218
        %vm2324 = vcmp.eq.f32.partialorder %v2323, 8.507059e+37
        %v2325 = vand.u32 %v2218, 2147483648
        %v2326 = vor.u32 1.1754944e-38, %v2325
        %v2327 = vsel %vm2324, %v2326, %v2322
        %v2328 = vmul.f32 %v2194, %v2327
        %v2329 = vrcp.pop %v2219
        %v2330 = vmul.f32 %v2219, %v2329
        %v2331 = vsub.f32 1.0, %v2330
        %v2332 = vmul.f32 %v2329, %v2331
        %v2333 = vadd.f32 %v2329, %v2332
        %vm2334 = vweird.f32 %v2219
        %vm2335 = vweird.f32 %v2329
        %vm2336 = vmor %vm2334, %vm2335
        %v2337 = vsel %vm2336, %v2329, %v2333
        %v2338 = vand.u32 2147483647, %v2219
        %vm2339 = vcmp.eq.f32.partialorder %v2338, 8.507059e+37
        %v2340 = vand.u32 %v2219, 2147483648
        %v2341 = vor.u32 1.1754944e-38, %v2340
        %v2342 = vsel %vm2339, %v2341, %v2337
        %v2343 = vmul.f32 %v2195, %v2342
        %v2344 = vrcp.pop %v2220
        %v2345 = vmul.f32 %v2220, %v2344
        %v2346 = vsub.f32 1.0, %v2345
        %v2347 = vmul.f32 %v2344, %v2346
        %v2348 = vadd.f32 %v2344, %v2347
        %vm2349 = vweird.f32 %v2220
        %vm2350 = vweird.f32 %v2344
        %vm2351 = vmor %vm2349, %vm2350
        %v2352 = vsel %vm2351, %v2344, %v2348
        %v2353 = vand.u32 2147483647, %v2220
        %vm2354 = vcmp.eq.f32.partialorder %v2353, 8.507059e+37
        %v2355 = vand.u32 %v2220, 2147483648
        %v2356 = vor.u32 1.1754944e-38, %v2355
        %v2357 = vsel %vm2354, %v2356, %v2352
        %v2358 = vmul.f32 %v2196, %v2357
        %v2359 = vrcp.pop %v2221
        %v2360 = vmul.f32 %v2221, %v2359
        %v2361 = vsub.f32 1.0, %v2360
        %v2362 = vmul.f32 %v2359, %v2361
        %v2363 = vadd.f32 %v2359, %v2362
        %vm2364 = vweird.f32 %v2221
        %vm2365 = vweird.f32 %v2359
        %vm2366 = vmor %vm2364, %vm2365
        %v2367 = vsel %vm2366, %v2359, %v2363
        %v2368 = vand.u32 2147483647, %v2221
        %vm2369 = vcmp.eq.f32.partialorder %v2368, 8.507059e+37
        %v2370 = vand.u32 %v2221, 2147483648
        %v2371 = vor.u32 1.1754944e-38, %v2370
        %v2372 = vsel %vm2369, %v2371, %v2367
        %v2373 = vmul.f32 %v2197, %v2372
        %v2374 = vrcp.pop %v2222
        %v2375 = vmul.f32 %v2222, %v2374
        %v2376 = vsub.f32 1.0, %v2375
        %v2377 = vmul.f32 %v2374, %v2376
        %v2378 = vadd.f32 %v2374, %v2377
        %vm2379 = vweird.f32 %v2222
        %vm2380 = vweird.f32 %v2374
        %vm2381 = vmor %vm2379, %vm2380
        %v2382 = vsel %vm2381, %v2374, %v2378
        %v2383 = vand.u32 2147483647, %v2222
        %vm2384 = vcmp.eq.f32.partialorder %v2383, 8.507059e+37
        %v2385 = vand.u32 %v2222, 2147483648
        %v2386 = vor.u32 1.1754944e-38, %v2385
        %v2387 = vsel %vm2384, %v2386, %v2382
        %v2388 = vmul.f32 %v2198, %v2387
        %v2389 = vrcp.pop %v2223
        %v2390 = vmul.f32 %v2223, %v2389
        %v2391 = vsub.f32 1.0, %v2390
        %v2392 = vmul.f32 %v2389, %v2391
        %v2393 = vadd.f32 %v2389, %v2392
        %vm2394 = vweird.f32 %v2223
        %vm2395 = vweird.f32 %v2389
        %vm2396 = vmor %vm2394, %vm2395
        %v2397 = vsel %vm2396, %v2389, %v2393
        %v2398 = vand.u32 2147483647, %v2223
        %vm2399 = vcmp.eq.f32.partialorder %v2398, 8.507059e+37
        %v2400 = vand.u32 %v2223, 2147483648
        %v2401 = vor.u32 1.1754944e-38, %v2400
        %v2402 = vsel %vm2399, %v2401, %v2397
        %v2403 = vmul.f32 %v2199, %v2402
        %v2404 = vmul.f32 %v1998, %v2238
        %v2405 = vmul.f32 %v2013, %v2253
        %v2406 = vmul.f32 %v2028, %v2268
        %v2407 = vmul.f32 %v2043, %v2283
        %v2408 = vmul.f32 %v2058, %v2298
        %v2409 = vmul.f32 %v2073, %v2313
        %v2410 = vmul.f32 %v2088, %v2328
        %v2411 = vmul.f32 %v2103, %v2343
        %v2412 = vmul.f32 %v2118, %v2358
        %v2413 = vmul.f32 %v2133, %v2373
        %v2414 = vmul.f32 %v2148, %v2388
        %v2415 = vmul.f32 %v2163, %v2403
        %v2416 = vsel %vm370, %v2404, 0.0
        %2417 = vadd.xlane.f32.xlu0 %v2416
        %v2418 = vpop.xlane.xlu0 %2417
        %v2419 = vsel %vm370, %v2405, 0.0
        %2420 = vadd.xlane.f32.xlu0 %v2419
        %v2421 = vpop.xlane.xlu0 %2420
        %v2422 = vsel %vm370, %v2406, 0.0
        %2423 = vadd.xlane.f32.xlu0 %v2422
        %v2424 = vpop.xlane.xlu0 %2423
        %v2425 = vsel %vm370, %v2407, 0.0
        %2426 = vadd.xlane.f32.xlu0 %v2425
        %v2427 = vpop.xlane.xlu0 %2426
        %v2428 = vsel %vm370, %v2408, 0.0
        %2429 = vadd.xlane.f32.xlu0 %v2428
        %v2430 = vpop.xlane.xlu0 %2429
        %v2431 = vsel %vm370, %v2409, 0.0
        %2432 = vadd.xlane.f32.xlu0 %v2431
        %v2433 = vpop.xlane.xlu0 %2432
        %v2434 = vsel %vm370, %v2410, 0.0
        %2435 = vadd.xlane.f32.xlu0 %v2434
        %v2436 = vpop.xlane.xlu0 %2435
        %v2437 = vsel %vm370, %v2411, 0.0
        %2438 = vadd.xlane.f32.xlu0 %v2437
        %v2439 = vpop.xlane.xlu0 %2438
        %v2440 = vsel %vm370, %v2412, 0.0
        %2441 = vadd.xlane.f32.xlu0 %v2440
        %v2442 = vpop.xlane.xlu0 %2441
        %v2443 = vsel %vm370, %v2413, 0.0
        %2444 = vadd.xlane.f32.xlu0 %v2443
        %v2445 = vpop.xlane.xlu0 %2444
        %v2446 = vsel %vm370, %v2414, 0.0
        %2447 = vadd.xlane.f32.xlu0 %v2446
        %v2448 = vpop.xlane.xlu0 %2447
        %v2449 = vsel %vm370, %v2415, 0.0
        %2450 = vadd.xlane.f32.xlu0 %v2449
        %v2451 = vpop.xlane.xlu0 %2450
        %v2452 = vadd.f32 %v2418, %v2421
        %v2453 = vrot.slane %v2452, 4
        %v2454 = vadd.f32 %v2452, %v2453
        %v2455 = vrot.slane %v2454, 2
        %v2456 = vadd.f32 %v2454, %v2455
        %v2457 = vrot.slane %v2456, 1
        %v2458 = vadd.f32 %v2456, %v2457
        %v2459 = vadd.f32 %v2424, %v2427
        %v2460 = vrot.slane %v2459, 4
        %v2461 = vadd.f32 %v2459, %v2460
        %v2462 = vrot.slane %v2461, 2
        %v2463 = vadd.f32 %v2461, %v2462
        %v2464 = vrot.slane %v2463, 1
        %v2465 = vadd.f32 %v2463, %v2464
        %v2466 = vadd.f32 %v2430, %v2433
        %v2467 = vrot.slane %v2466, 4
        %v2468 = vadd.f32 %v2466, %v2467
        %v2469 = vrot.slane %v2468, 2
        %v2470 = vadd.f32 %v2468, %v2469
        %v2471 = vrot.slane %v2470, 1
        %v2472 = vadd.f32 %v2470, %v2471
        %v2473 = vadd.f32 %v2436, %v2439
        %v2474 = vrot.slane %v2473, 4
        %v2475 = vadd.f32 %v2473, %v2474
        %v2476 = vrot.slane %v2475, 2
        %v2477 = vadd.f32 %v2475, %v2476
        %v2478 = vrot.slane %v2477, 1
        %v2479 = vadd.f32 %v2477, %v2478
        %v2480 = vadd.f32 %v2442, %v2445
        %v2481 = vrot.slane %v2480, 4
        %v2482 = vadd.f32 %v2480, %v2481
        %v2483 = vrot.slane %v2482, 2
        %v2484 = vadd.f32 %v2482, %v2483
        %v2485 = vrot.slane %v2484, 1
        %v2486 = vadd.f32 %v2484, %v2485
        %v2487 = vadd.f32 %v2448, %v2451
        %v2488 = vrot.slane %v2487, 4
        %v2489 = vadd.f32 %v2487, %v2488
        %v2490 = vrot.slane %v2489, 2
        %v2491 = vadd.f32 %v2489, %v2490
        %v2492 = vrot.slane %v2491, 1
        %v2493 = vadd.f32 %v2491, %v2492
        %v2494 = vadd.f32 %v2458, %v2465
        %v2495 = vadd.f32 %v2494, %v2472
        %v2496 = vadd.f32 %v2479, %v2486
        %v2497 = vadd.f32 %v2496, %v2493
        %v2498 = vmul.f32 %v2495, 0.0013020834
        %v2499 = vmul.f32 %v2497, 0.0013020834
        %vm2500 = vcmask 0
        %2501 = vst.msk [vmem:[%s296] sm:$0x1] %vm2500, %v2498
        %2502 = vst.msk [vmem:[%s296 + $0x1] sm:$0x1] %vm2500, %v2499
        %s2503 = smul.u32 2, %s22
        %p2504 = scmp.lt.s32.totalorder %s2503, 3
        %s2505 = scalar_select %p2504, %s2503, 3
        %s2506 = scalar_lea.vmem %s4, %s2505
        // Predicated region
        $region53: #{tpu_custom_call.1} parent=35 // pred_check
          %p2507 = pneg %p134
        $region54: #{tpu_custom_call.1} parent=35 // pred_check_branch
          %2509 = sbr.rel (%p2507) target = $region56
        $region55: #{tpu_custom_call.1} parent=35 // pred_region
          %s2510 = smul.u32 2, %s22
        $region56: #{tpu_custom_call.1} parent=35 // pred_fallthru
          _
      $region36: #{tpu_custom_call.1} parent=5 // pred_fallthru
        _
      %p2511 = scmp.le.s32.totalorder 2, %s17
      // Predicated region
      $region57: #{tpu_custom_call.1} parent=5 // pred_check
        %p2512 = pneg %p2511
      $region58: #{tpu_custom_call.1} parent=5 // pred_check_branch
        %2514 = sbr.rel (%p2512) target = $region60
      $region59: #{tpu_custom_call.1} parent=5 // pred_region
        %s2515 = ssub.s32 %s17, 2
        // Predicated region
        $region61: #{tpu_custom_call.1} parent=59 // pred_check
          %p2516 = pneg %p140
        $region62: #{tpu_custom_call.1} parent=59 // pred_check_branch
          %2518 = sbr.rel (%p2516) target = $region64
        $region63: #{tpu_custom_call.1} parent=59 // pred_region
          %s2519 = smul.u32 2, %s23
          %p2520 = scmp.lt.s32.totalorder %s2519, 3
          %s2521 = scalar_select %p2520, %s2519, 3
          %s2522 = scalar_lea.vmem %s4, %s2521
        $region64: #{tpu_custom_call.1} parent=59 // pred_fallthru
          _
      $region60: #{tpu_custom_call.1} parent=5 // pred_fallthru
        _
    $region6: #{tpu_custom_call.1} parent=1 // loop_footer
      %s21 = sadd.s32 1, %s17
    $region7: #{tpu_custom_call.1} parent=1 // loop_footer_branch
      %16 = sbr.rel target = $region3
    $region8: #{tpu_custom_call.1} parent=1 // loop_exit
      _
    %2523 = vsyncpa [#allocation4], 1
    %s2524 = scalar_lea.sflag [#allocation4], 1
    %2525 = vsyncpa %s2524, 1
    %2526 = vsyncpa [#allocation6], 1
    %s2527 = scalar_lea.sflag [#allocation6], 1
    %2528 = vsyncpa %s2527, 1
    %2529 = vsyncpa [#allocation9], 1

</llo_original>
